<compile_context>
chip_gen: v5e
topology: v5e:2x2
jax: 0.10.0
libtpu: 0.0.40
codegen_flags: <defaults>
</compile_context>

<pallas_src>
import functools
import math

import jax
import jax.numpy as jnp
from jax import lax
from jax.experimental import pallas as pl
from jax.experimental.pallas import tpu as pltpu


def _round_up(x, m):
    return (x + m - 1) // m * m


def _bilstm_recurrent_kernel(gx_ref, whh_ref, b_ref, len_ref, o_ref, h_scr, c_scr, *,
                             time_chunk, num_chunks, hidden_pad, compute_dtype):
    """One grid step = one direction (axis 0) x one time-chunk (axis 1).

    gx_ref : (Tc, B, 4H)  precomputed input projection for this chunk/direction (f32)
    whh_ref: (H, 4H)      recurrent weight (transposed) for this direction
    b_ref  : (1, 4H)      fused bias (b_ih + b_hh) for this direction (f32)
    len_ref: (B, 1)       valid lengths (int32)
    o_ref  : (Tc, B, H)   this direction's half of the (T, B, 2H) output
    h_scr  : (2, B, H)    f32 recurrent hidden state, one slot per direction
    c_scr  : (2, B, H)    f32 recurrent cell state, one slot per direction
    """
    d = pl.program_id(0)         # 0 = forward, 1 = backward
    ci = pl.program_id(1)        # time-chunk counter (per direction)
    Tc = time_chunk
    H = hidden_pad

    @pl.when(ci == 0)
    def _():
        h_scr[d] = jnp.zeros(h_scr.shape[1:], h_scr.dtype)
        c_scr[d] = jnp.zeros(c_scr.shape[1:], c_scr.dtype)

    # absolute chunk index along the sequence (backward walks chunks in reverse)
    chunk = (1 - d) * ci + d * (num_chunks - 1 - ci)
    base = chunk * Tc

    lens = len_ref[...]                            # (B, 1) int32, hoisted
    bias = b_ref[...]                              # (1, 4H) f32, hoisted
    w_rec = whh_ref[...].astype(compute_dtype)     # (H, 4H), hoisted out of the loop

    def step(s, carry):
        h, c_state = carry
        # position inside the chunk (backward walks the chunk in reverse)
        p = (1 - d) * s + d * (Tc - 1 - s)
        t_abs = base + p

        gates = gx_ref[p] + bias + jnp.dot(
            h.astype(compute_dtype), w_rec,
            preferred_element_type=jnp.float32)    # (B, 4H) f32
        i_g = jax.nn.sigmoid(gates[:, 0 * H:1 * H])
        f_g = jax.nn.sigmoid(gates[:, 1 * H:2 * H])
        g_g = jnp.tanh(gates[:, 2 * H:3 * H])
        o_g = jax.nn.sigmoid(gates[:, 3 * H:4 * H])

        c_new = f_g * c_state + i_g * g_g
        h_new = o_g * jnp.tanh(c_new)

        valid = t_abs < lens                       # (B, 1) packed-sequence mask
        h = jnp.where(valid, h_new, h)
        c_state = jnp.where(valid, c_new, c_state)
        o_ref[p] = jnp.where(valid, h_new, 0.0).astype(o_ref.dtype)
        return h, c_state

    h0 = h_scr[d]
    c0 = c_scr[d]
    # Fully unroll tiny chunks; partially unroll (x8) longer chunks so the LLO
    # scheduler can overlap gate loads / EUP transcendentals across timesteps.
    unroll = True if Tc <= 8 else 8
    h_f, c_f = lax.fori_loop(0, Tc, step, (h0, c0), unroll=unroll)
    h_scr[d] = h_f
    c_scr[d] = c_f


@functools.partial(jax.jit, static_argnames=("time_chunk", "use_bf16_mxu"))
def _bilstm_full(params, x, x_len, *, time_chunk=64, use_bf16_mxu=False):
    """Full-length bidirectional LSTM output, shape (B, T, 2H)."""
    B, T, D = x.shape
    H = params["whh_f"].shape[1]
    compute_dtype = jnp.bfloat16 if use_bf16_mxu else jnp.float32

    # ---- lane/sublane-dense padding -------------------------------------
    H_pad = _round_up(max(H, 1), 128)      # lane-dense per-direction hidden
    B_pad = _round_up(max(B, 1), 8)        # sublane-dense batch
    Tc = max(1, min(time_chunk, T))        # timesteps per grid step
    nc = pl.cdiv(T, Tc)
    T_pad = nc * Tc

    def pad_gate_cols(w_t):
        # (..., 4H) -> (..., 4*H_pad), zero-padding each gate slab to H_pad lanes.
        lead = w_t.shape[:-1]
        w4 = w_t.reshape(lead + (4, H))
        w4 = jnp.pad(w4, [(0, 0)] * len(lead) + [(0, 0), (0, H_pad - H)])
        return w4.reshape(lead + (4 * H_pad,))

    def prep_dir(wih, whh, b):
        wih_t = pad_gate_cols(wih.T.astype(jnp.float32))        # (D, 4H_pad)
        whh_t = pad_gate_cols(whh.T.astype(jnp.float32))        # (H, 4H_pad)
        whh_t = jnp.pad(whh_t, [(0, H_pad - H), (0, 0)])        # (H_pad, 4H_pad)
        b_p = pad_gate_cols(b.astype(jnp.float32))              # (4H_pad,)
        return wih_t, whh_t, b_p

    wih_f, whh_f, b_f = prep_dir(params["wih_f"], params["whh_f"], params["b_f"])
    wih_b, whh_b, b_b = prep_dir(params["wih_b"], params["whh_b"], params["b_b"])

    wih_all = jnp.stack([wih_f, wih_b]).astype(compute_dtype)   # (2, D, 4H_pad)
    whh_all = jnp.stack([whh_f, whh_b]).astype(compute_dtype)   # (2, H_pad, 4H_pad)
    b_all = jnp.stack([b_f, b_b]).reshape(2, 1, 4 * H_pad)      # (2, 1, 4H_pad) f32

    # ---- hoisted input projection: one big MXU matmul for both directions.
    # The 'btd,kdg->ktbg' contraction also folds the (B,T,D)->(T,B,D) transpose.
    # Bias is added inside the kernel (avoids an extra full-size HBM pass).
    x_p = jnp.pad(x.astype(jnp.float32),
                  [(0, B_pad - B), (0, T_pad - T), (0, 0)]).astype(compute_dtype)
    gates_x = jnp.einsum("btd,kdg->ktbg", x_p, wih_all,
                         preferred_element_type=jnp.float32)    # (2, T_pad, B_pad, 4H_pad)

    lens = jnp.pad(x_len.astype(jnp.int32), (0, B_pad - B)).reshape(B_pad, 1)

    # ---- recurrent kernel: grid = (direction, time-chunk) -----------------
    def chunk_idx(d, c):   # backward direction walks time-chunks in reverse
        return (1 - d) * c + d * (nc - 1 - c)

    kernel = functools.partial(
        _bilstm_recurrent_kernel, time_chunk=Tc, num_chunks=nc,
        hidden_pad=H_pad, compute_dtype=compute_dtype)

    out = pl.pallas_call(
        kernel,
        out_shape=jax.ShapeDtypeStruct((T_pad, B_pad, 2 * H_pad), jnp.float32),
        grid_spec=pltpu.PrefetchScalarGridSpec(
            num_scalar_prefetch=0,
            grid=(2, nc),
            in_specs=[
                # precomputed input projection, one time-chunk per grid step
                pl.BlockSpec((None, Tc, B_pad, 4 * H_pad),
                             lambda d, c: (d, chunk_idx(d, c), 0, 0)),
                # recurrent weight for this direction (loop-invariant across chunks)
                pl.BlockSpec((None, H_pad, 4 * H_pad), lambda d, c: (d, 0, 0)),
                # fused bias for this direction (loop-invariant, tiny)
                pl.BlockSpec((None, 1, 4 * H_pad), lambda d, c: (d, 0, 0)),
                # lengths (loop-invariant, resident)
                pl.BlockSpec((B_pad, 1), lambda d, c: (0, 0)),
            ],
            # forward writes [..., :H_pad], backward writes [..., H_pad:]:
            # the [h_f | h_b] concat happens in-place, lane-dense stores.
            out_specs=pl.BlockSpec((Tc, B_pad, H_pad),
                                   lambda d, c: (chunk_idx(d, c), 0, d)),
            scratch_shapes=[pltpu.VMEM((2, B_pad, H_pad), jnp.float32),  # h carry
                            pltpu.VMEM((2, B_pad, H_pad), jnp.float32)],  # c carry
        ),
        compiler_params=pltpu.CompilerParams(
            # direction axis is independent -> megacore-parallel on v7x;
            # time-chunk axis carries the recurrence -> sequential.
            dimension_semantics=("parallel", "arbitrary")),
    )(gates_x, whh_all, b_all, lens)

    # ---- unpad & return batch-first (B, T, 2H) ---------------------------
    if H_pad == H:
        y = out[:T, :B, :]
    else:
        y = jnp.concatenate([out[:T, :B, :H],
                             out[:T, :B, H_pad:H_pad + H]], axis=-1)
    return jnp.transpose(y, (1, 0, 2))


def bilstm_embedding_forward(params, x, x_len, *, time_chunk=64, use_bf16_mxu=False):
    """Pallas equivalent of BiLSTMEmbedding.forward.

    x: (B, T, input_dim), x_len: (B,) int -> (B, max(x_len), output_dim)
    """
    out = _bilstm_full(params, x, x_len, time_chunk=time_chunk,
                       use_bf16_mxu=use_bf16_mxu)
    # pad_packed_sequence trims to the longest valid length.  Done outside the
    # jitted computation so x_len is never concretized at trace time.
    t_out = int(jax.device_get(x_len).max())
    return out[:, :t_out, :]


def init_params(key, input_dim, output_dim):
    """Deterministic init matching nn.LSTM shapes (bidirectional, 1 layer)."""
    H = output_dim // 2
    stdv = 1.0 / math.sqrt(H)
    ks = jax.random.split(key, 8)

    def u(k, shape):
        return jax.random.uniform(k, shape, jnp.float32, -stdv, stdv)

    return {
        "wih_f": u(ks[0], (4 * H, input_dim)),
        "whh_f": u(ks[1], (4 * H, H)),
        "b_f": u(ks[2], (4 * H,)) + u(ks[3], (4 * H,)),   # b_ih + b_hh
        "wih_b": u(ks[4], (4 * H, input_dim)),
        "whh_b": u(ks[5], (4 * H, H)),
        "b_b": u(ks[6], (4 * H,)) + u(ks[7], (4 * H,)),
    }


# ----------------------------- pure-JAX reference -----------------------------
def _lstm_ref_dir(x, x_len, wih, whh, b, reverse):
    B, T, D = x.shape
    H = whh.shape[1]
    h = jnp.zeros((B, H), jnp.float32)
    c = jnp.zeros((B, H), jnp.float32)
    outs = [None] * T
    order = range(T - 1, -1, -1) if reverse else range(T)
    for time in order:
        xt = x[:, time, :]
        gates = xt @ wih.T + h @ whh.T + b
        i = jax.nn.sigmoid(gates[:, :H])
        f = jax.nn.sigmoid(gates[:, H:2 * H])
        g = jnp.tanh(gates[:, 2 * H:3 * H])
        o = jax.nn.sigmoid(gates[:, 3 * H:])
        c_new = f * c + i * g
        h_new = o * jnp.tanh(c_new)
        valid = (time < x_len)[:, None]
        h = jnp.where(valid, h_new, h)
        c = jnp.where(valid, c_new, c)
        outs[time] = jnp.where(valid, h_new, 0.0)
    return jnp.stack(outs, axis=1)


def bilstm_ref(params, x, x_len):
    of = _lstm_ref_dir(x, x_len, params["wih_f"], params["whh_f"], params["b_f"], False)
    ob = _lstm_ref_dir(x, x_len, params["wih_b"], params["whh_b"], params["b_b"], True)
    out = jnp.concatenate([of, ob], axis=-1)
    return out[:, :int(jnp.max(x_len)), :]


if __name__ == "__main__":
    B, T, INPUT_DIM, OUTPUT_DIM = 2, 8, 16, 32   # hidden per direction = 16

    key = jax.random.PRNGKey(0)
    k_x, k_p = jax.random.split(key)
    x = jax.random.normal(k_x, (B, T, INPUT_DIM), jnp.float32)
    x_len = jnp.array([8, 5], jnp.int32)

    params = init_params(k_p, INPUT_DIM, OUTPUT_DIM)

    # f32 path: exact-semantics check against the pure-JAX reference.
    out = jax.block_until_ready(bilstm_embedding_forward(params, x, x_len))
    assert out.shape == (B, int(jax.device_get(x_len).max()), OUTPUT_DIM), out.shape

    ref = jax.block_until_ready(bilstm_ref(params, x, x_len))
    if not jnp.allclose(out, ref, atol=2e-3, rtol=2e-3):
        raise AssertionError("Pallas BiLSTM (f32) output mismatch vs. JAX reference")

    # bf16-MXU-operand path (recommended for v6e/v7x): f32 accumulation and
    # f32 h/c carries, so only a small numerical drift vs. the f32 reference.
    out_bf16 = jax.block_until_ready(
        bilstm_embedding_forward(params, x, x_len, use_bf16_mxu=True))
    if not jnp.allclose(out_bf16, ref, atol=5e-2, rtol=5e-2):
        raise AssertionError("Pallas BiLSTM (bf16 MXU) output mismatch vs. JAX reference")

    print("KERNEL_OK")
</pallas_src>

<mosaic_0001>
module attributes {stable_mosaic.version = 11 : i64} {
  func.func @_bilstm_recurrent_kernel(%arg0: i32, %arg1: i32, %arg2: memref<1x8x8x512xf32, #tpu.memory_space<vmem>>, %arg3: memref<1x128x512xf32, #tpu.memory_space<vmem>>, %arg4: memref<1x1x512xf32, #tpu.memory_space<vmem>>, %arg5: memref<8x1xi32, #tpu.memory_space<vmem>>, %arg6: memref<8x8x128xf32, #tpu.memory_space<vmem>>, %arg7: memref<2x8x128xf32, #tpu.memory_space<vmem>>, %arg8: memref<2x8x128xf32, #tpu.memory_space<vmem>>) attributes {dimension_semantics = [#tpu.dimension_semantics<parallel>, #tpu.dimension_semantics<arbitrary>], iteration_bounds = array<i64: 2, 1>, scalar_prefetch = 0 : i64, scratch_operands = 2 : i64, tpu.core_type = #tpu.core_type<tc>, window_params = [{transform_indices = @transform_0, window_bounds = array<i64: 1, 8, 8, 512>}, {transform_indices = @transform_1, window_bounds = array<i64: 1, 128, 512>}, {transform_indices = @transform_2, window_bounds = array<i64: 1, 1, 512>}, {pipeline_mode = #tpu.pipeline_mode<synchronous>, transform_indices = @transform_3, window_bounds = array<i64: 8, 1>}, {transform_indices = @transform_4, window_bounds = array<i64: 8, 8, 128>}]} {
    %c0_i32 = arith.constant 0 : i32
    %0 = arith.cmpi eq, %arg1, %c0_i32 : i32
    %1 = arith.extui %0 : i1 to i32
    %c0_i32_0 = arith.constant 0 : i32
    %2 = arith.cmpi ne, %1, %c0_i32_0 : i32
    scf.if %2 {
      %cst_115 = arith.constant 0.000000e+00 : f32
      %460 = vector.broadcast %cst_115 : f32 to vector<8x128xf32>
      %461 = arith.index_cast %arg0 : i32 to index
      %c0_116 = arith.constant 0 : index
      %c0_117 = arith.constant 0 : index
      %462 = vector.load %arg7[%461, %c0_116, %c0_117] : memref<2x8x128xf32, #tpu.memory_space<vmem>>, vector<1x8x128xf32>
      %463 = vector.shape_cast %462 : vector<1x8x128xf32> to vector<8x128xf32>
      %464 = vector.shape_cast %460 : vector<8x128xf32> to vector<1x8x128xf32>
      tpu.vector_store %arg7[%461, %c0_116, %c0_117], %464 {strides = array<i32>} : memref<2x8x128xf32, #tpu.memory_space<vmem>>, vector<1x8x128xf32>,
      %cst_118 = arith.constant 0.000000e+00 : f32
      %465 = vector.broadcast %cst_118 : f32 to vector<8x128xf32>
      %466 = arith.index_cast %arg0 : i32 to index
      %c0_119 = arith.constant 0 : index
      %c0_120 = arith.constant 0 : index
      %467 = vector.load %arg8[%466, %c0_119, %c0_120] : memref<2x8x128xf32, #tpu.memory_space<vmem>>, vector<1x8x128xf32>
      %468 = vector.shape_cast %467 : vector<1x8x128xf32> to vector<8x128xf32>
      %469 = vector.shape_cast %465 : vector<8x128xf32> to vector<1x8x128xf32>
      tpu.vector_store %arg8[%466, %c0_119, %c0_120], %469 {strides = array<i32>} : memref<2x8x128xf32, #tpu.memory_space<vmem>>, vector<1x8x128xf32>,
    } else {
    }
    %c1_i32 = arith.constant 1 : i32
    %3 = arith.subi %c1_i32, %arg0 : i32
    %4 = arith.muli %3, %arg1 : i32
    %c0_i32_1 = arith.constant 0 : i32
    %5 = arith.subi %c0_i32_1, %arg1 : i32
    %6 = arith.muli %arg0, %5 : i32
    %7 = arith.addi %4, %6 : i32
    %c8_i32 = arith.constant 8 : i32
    %8 = arith.muli %7, %c8_i32 : i32
    %c0 = arith.constant 0 : index
    %c0_2 = arith.constant 0 : index
    %9 = vector.load %arg5[%c0, %c0_2] : memref<8x1xi32, #tpu.memory_space<vmem>>, vector<8x1xi32>
    %c0_3 = arith.constant 0 : index
    %c0_4 = arith.constant 0 : index
    %c0_5 = arith.constant 0 : index
    %10 = vector.load %arg4[%c0_3, %c0_4, %c0_5] : memref<1x1x512xf32, #tpu.memory_space<vmem>>, vector<1x1x512xf32>
    %11 = vector.shape_cast %10 : vector<1x1x512xf32> to vector<1x512xf32>
    %c0_6 = arith.constant 0 : index
    %c0_7 = arith.constant 0 : index
    %c0_8 = arith.constant 0 : index
    %12 = vector.load %arg3[%c0_6, %c0_7, %c0_8] : memref<1x128x512xf32, #tpu.memory_space<vmem>>, vector<1x128x512xf32>
    %13 = vector.shape_cast %12 : vector<1x128x512xf32> to vector<128x512xf32>
    %14 = arith.index_cast %arg0 : i32 to index
    %c0_9 = arith.constant 0 : index
    %c0_10 = arith.constant 0 : index
    %15 = vector.load %arg7[%14, %c0_9, %c0_10] : memref<2x8x128xf32, #tpu.memory_space<vmem>>, vector<1x8x128xf32>
    %16 = vector.shape_cast %15 : vector<1x8x128xf32> to vector<8x128xf32>
    %17 = arith.index_cast %arg0 : i32 to index
    %c0_11 = arith.constant 0 : index
    %c0_12 = arith.constant 0 : index
    %18 = vector.load %arg8[%17, %c0_11, %c0_12] : memref<2x8x128xf32, #tpu.memory_space<vmem>>, vector<1x8x128xf32>
    %19 = vector.shape_cast %18 : vector<1x8x128xf32> to vector<8x128xf32>
    %c0_i32_13 = arith.constant 0 : i32
    %c1_i32_14 = arith.constant 1 : i32
    %20 = arith.subi %c1_i32_14, %arg0 : i32
    %21 = arith.muli %20, %c0_i32_13 : i32
    %c7_i32 = arith.constant 7 : i32
    %22 = arith.subi %c7_i32, %c0_i32_13 : i32
    %23 = arith.muli %arg0, %22 : i32
    %24 = arith.addi %21, %23 : i32
    %25 = arith.addi %8, %24 : i32
    %c0_15 = arith.constant 0 : index
    %26 = arith.index_cast %24 : i32 to index
    %c0_16 = arith.constant 0 : index
    %c0_17 = arith.constant 0 : index
    %27 = vector.load %arg2[%c0_15, %26, %c0_16, %c0_17] : memref<1x8x8x512xf32, #tpu.memory_space<vmem>>, vector<1x1x8x512xf32>
    %28 = vector.shape_cast %27 : vector<1x1x8x512xf32> to vector<8x512xf32>
    %29 = vector.broadcast %11 : vector<1x512xf32> to vector<8x512xf32>
    %30 = arith.addf %28, %29 : vector<8x512xf32>
    %cst = arith.constant dense<0.000000e+00> : vector<8x512xf32>
    %31 = tpu.matmul %16, %13, %cst {dimension_numbers = #tpu.dot_dimension_numbers<[1], [0], [0], [1], [0, 0, 1, 1], [], []>} : vector<8x128xf32>, vector<128x512xf32>, vector<8x512xf32> -> vector<8x512xf32>
    %32 = arith.addf %30, %31 : vector<8x512xf32>
    %33 = vector.extract_strided_slice %32 {offsets = [0, 0], sizes = [8, 128], strides = [1, 1]} : vector<8x512xf32> to vector<8x128xf32>
    %34 = arith.negf %33 : vector<8x128xf32>
    %35 = math.exp %34 : vector<8x128xf32>
    %cst_18 = arith.constant 1.000000e+00 : f32
    %36 = vector.broadcast %cst_18 : f32 to vector<8x128xf32>
    %37 = arith.addf %36, %35 : vector<8x128xf32>
    %38 = arith.divf %36, %37 : vector<8x128xf32>
    %39 = vector.extract_strided_slice %32 {offsets = [0, 128], sizes = [8, 128], strides = [1, 1]} : vector<8x512xf32> to vector<8x128xf32>
    %40 = arith.negf %39 : vector<8x128xf32>
    %41 = math.exp %40 : vector<8x128xf32>
    %cst_19 = arith.constant 1.000000e+00 : f32
    %42 = vector.broadcast %cst_19 : f32 to vector<8x128xf32>
    %43 = arith.addf %42, %41 : vector<8x128xf32>
    %44 = arith.divf %42, %43 : vector<8x128xf32>
    %45 = vector.extract_strided_slice %32 {offsets = [0, 256], sizes = [8, 128], strides = [1, 1]} : vector<8x512xf32> to vector<8x128xf32>
    %46 = math.tanh %45 : vector<8x128xf32>
    %47 = vector.extract_strided_slice %32 {offsets = [0, 384], sizes = [8, 128], strides = [1, 1]} : vector<8x512xf32> to vector<8x128xf32>
    %48 = arith.negf %47 : vector<8x128xf32>
    %49 = math.exp %48 : vector<8x128xf32>
    %cst_20 = arith.constant 1.000000e+00 : f32
    %50 = vector.broadcast %cst_20 : f32 to vector<8x128xf32>
    %51 = arith.addf %50, %49 : vector<8x128xf32>
    %52 = arith.divf %50, %51 : vector<8x128xf32>
    %53 = arith.mulf %44, %19 : vector<8x128xf32>
    %54 = arith.mulf %38, %46 : vector<8x128xf32>
    %55 = arith.addf %53, %54 : vector<8x128xf32>
    %56 = math.tanh %55 : vector<8x128xf32>
    %57 = arith.mulf %52, %56 : vector<8x128xf32>
    %58 = vector.broadcast %25 : i32 to vector<8x1xi32>
    %59 = arith.cmpi slt, %58, %9 : vector<8x1xi32>
    %60 = vector.shape_cast %59 : vector<8x1xi1> to vector<8x1xi1>
    %61 = vector.broadcast %60 : vector<8x1xi1> to vector<8x128xi1>
    %62 = arith.select %61, %57, %16 : vector<8x128xi1>, vector<8x128xf32>
    %63 = vector.shape_cast %59 : vector<8x1xi1> to vector<8x1xi1>
    %64 = vector.broadcast %63 : vector<8x1xi1> to vector<8x128xi1>
    %65 = arith.select %64, %55, %19 : vector<8x128xi1>, vector<8x128xf32>
    %cst_21 = arith.constant 0.000000e+00 : f32
    %66 = vector.shape_cast %59 : vector<8x1xi1> to vector<8x1xi1>
    %67 = vector.broadcast %66 : vector<8x1xi1> to vector<8x128xi1>
    %68 = vector.broadcast %cst_21 : f32 to vector<8x128xf32>
    %69 = arith.select %67, %57, %68 : vector<8x128xi1>, vector<8x128xf32>
    %70 = arith.index_cast %24 : i32 to index
    %c0_22 = arith.constant 0 : index
    %c0_23 = arith.constant 0 : index
    %71 = vector.load %arg6[%70, %c0_22, %c0_23] : memref<8x8x128xf32, #tpu.memory_space<vmem>>, vector<1x8x128xf32>
    %72 = vector.shape_cast %71 : vector<1x8x128xf32> to vector<8x128xf32>
    %73 = vector.shape_cast %69 : vector<8x128xf32> to vector<1x8x128xf32>
    tpu.vector_store %arg6[%70, %c0_22, %c0_23], %73 {strides = array<i32>} : memref<8x8x128xf32, #tpu.memory_space<vmem>>, vector<1x8x128xf32>,
    %c1_i32_24 = arith.constant 1 : i32
    %c1_i32_25 = arith.constant 1 : i32
    %74 = arith.subi %c1_i32_25, %arg0 : i32
    %75 = arith.muli %74, %c1_i32_24 : i32
    %c7_i32_26 = arith.constant 7 : i32
    %76 = arith.subi %c7_i32_26, %c1_i32_24 : i32
    %77 = arith.muli %arg0, %76 : i32
    %78 = arith.addi %75, %77 : i32
    %79 = arith.addi %8, %78 : i32
    %c0_27 = arith.constant 0 : index
    %80 = arith.index_cast %78 : i32 to index
    %c0_28 = arith.constant 0 : index
    %c0_29 = arith.constant 0 : index
    %81 = vector.load %arg2[%c0_27, %80, %c0_28, %c0_29] : memref<1x8x8x512xf32, #tpu.memory_space<vmem>>, vector<1x1x8x512xf32>
    %82 = vector.shape_cast %81 : vector<1x1x8x512xf32> to vector<8x512xf32>
    %83 = vector.broadcast %11 : vector<1x512xf32> to vector<8x512xf32>
    %84 = arith.addf %82, %83 : vector<8x512xf32>
    %cst_30 = arith.constant dense<0.000000e+00> : vector<8x512xf32>
    %85 = tpu.matmul %62, %13, %cst_30 {dimension_numbers = #tpu.dot_dimension_numbers<[1], [0], [0], [1], [0, 0, 1, 1], [], []>} : vector<8x128xf32>, vector<128x512xf32>, vector<8x512xf32> -> vector<8x512xf32>
    %86 = arith.addf %84, %85 : vector<8x512xf32>
    %87 = vector.extract_strided_slice %86 {offsets = [0, 0], sizes = [8, 128], strides = [1, 1]} : vector<8x512xf32> to vector<8x128xf32>
    %88 = arith.negf %87 : vector<8x128xf32>
    %89 = math.exp %88 : vector<8x128xf32>
    %cst_31 = arith.constant 1.000000e+00 : f32
    %90 = vector.broadcast %cst_31 : f32 to vector<8x128xf32>
    %91 = arith.addf %90, %89 : vector<8x128xf32>
    %92 = arith.divf %90, %91 : vector<8x128xf32>
    %93 = vector.extract_strided_slice %86 {offsets = [0, 128], sizes = [8, 128], strides = [1, 1]} : vector<8x512xf32> to vector<8x128xf32>
    %94 = arith.negf %93 : vector<8x128xf32>
    %95 = math.exp %94 : vector<8x128xf32>
    %cst_32 = arith.constant 1.000000e+00 : f32
    %96 = vector.broadcast %cst_32 : f32 to vector<8x128xf32>
    %97 = arith.addf %96, %95 : vector<8x128xf32>
    %98 = arith.divf %96, %97 : vector<8x128xf32>
    %99 = vector.extract_strided_slice %86 {offsets = [0, 256], sizes = [8, 128], strides = [1, 1]} : vector<8x512xf32> to vector<8x128xf32>
    %100 = math.tanh %99 : vector<8x128xf32>
    %101 = vector.extract_strided_slice %86 {offsets = [0, 384], sizes = [8, 128], strides = [1, 1]} : vector<8x512xf32> to vector<8x128xf32>
    %102 = arith.negf %101 : vector<8x128xf32>
    %103 = math.exp %102 : vector<8x128xf32>
    %cst_33 = arith.constant 1.000000e+00 : f32
    %104 = vector.broadcast %cst_33 : f32 to vector<8x128xf32>
    %105 = arith.addf %104, %103 : vector<8x128xf32>
    %106 = arith.divf %104, %105 : vector<8x128xf32>
    %107 = arith.mulf %98, %65 : vector<8x128xf32>
    %108 = arith.mulf %92, %100 : vector<8x128xf32>
    %109 = arith.addf %107, %108 : vector<8x128xf32>
    %110 = math.tanh %109 : vector<8x128xf32>
    %111 = arith.mulf %106, %110 : vector<8x128xf32>
    %112 = vector.broadcast %79 : i32 to vector<8x1xi32>
    %113 = arith.cmpi slt, %112, %9 : vector<8x1xi32>
    %114 = vector.shape_cast %113 : vector<8x1xi1> to vector<8x1xi1>
    %115 = vector.broadcast %114 : vector<8x1xi1> to vector<8x128xi1>
    %116 = arith.select %115, %111, %62 : vector<8x128xi1>, vector<8x128xf32>
    %117 = vector.shape_cast %113 : vector<8x1xi1> to vector<8x1xi1>
    %118 = vector.broadcast %117 : vector<8x1xi1> to vector<8x128xi1>
    %119 = arith.select %118, %109, %65 : vector<8x128xi1>, vector<8x128xf32>
    %cst_34 = arith.constant 0.000000e+00 : f32
    %120 = vector.shape_cast %113 : vector<8x1xi1> to vector<8x1xi1>
    %121 = vector.broadcast %120 : vector<8x1xi1> to vector<8x128xi1>
    %122 = vector.broadcast %cst_34 : f32 to vector<8x128xf32>
    %123 = arith.select %121, %111, %122 : vector<8x128xi1>, vector<8x128xf32>
    %124 = arith.index_cast %78 : i32 to index
    %c0_35 = arith.constant 0 : index
    %c0_36 = arith.constant 0 : index
    %125 = vector.load %arg6[%124, %c0_35, %c0_36] : memref<8x8x128xf32, #tpu.memory_space<vmem>>, vector<1x8x128xf32>
    %126 = vector.shape_cast %125 : vector<1x8x128xf32> to vector<8x128xf32>
    %127 = vector.shape_cast %123 : vector<8x128xf32> to vector<1x8x128xf32>
    tpu.vector_store %arg6[%124, %c0_35, %c0_36], %127 {strides = array<i32>} : memref<8x8x128xf32, #tpu.memory_space<vmem>>, vector<1x8x128xf32>,
    %c2_i32 = arith.constant 2 : i32
    %c1_i32_37 = arith.constant 1 : i32
    %128 = arith.subi %c1_i32_37, %arg0 : i32
    %129 = arith.muli %128, %c2_i32 : i32
    %c7_i32_38 = arith.constant 7 : i32
    %130 = arith.subi %c7_i32_38, %c2_i32 : i32
    %131 = arith.muli %arg0, %130 : i32
    %132 = arith.addi %129, %131 : i32
    %133 = arith.addi %8, %132 : i32
    %c0_39 = arith.constant 0 : index
    %134 = arith.index_cast %132 : i32 to index
    %c0_40 = arith.constant 0 : index
    %c0_41 = arith.constant 0 : index
    %135 = vector.load %arg2[%c0_39, %134, %c0_40, %c0_41] : memref<1x8x8x512xf32, #tpu.memory_space<vmem>>, vector<1x1x8x512xf32>
    %136 = vector.shape_cast %135 : vector<1x1x8x512xf32> to vector<8x512xf32>
    %137 = vector.broadcast %11 : vector<1x512xf32> to vector<8x512xf32>
    %138 = arith.addf %136, %137 : vector<8x512xf32>
    %cst_42 = arith.constant dense<0.000000e+00> : vector<8x512xf32>
    %139 = tpu.matmul %116, %13, %cst_42 {dimension_numbers = #tpu.dot_dimension_numbers<[1], [0], [0], [1], [0, 0, 1, 1], [], []>} : vector<8x128xf32>, vector<128x512xf32>, vector<8x512xf32> -> vector<8x512xf32>
    %140 = arith.addf %138, %139 : vector<8x512xf32>
    %141 = vector.extract_strided_slice %140 {offsets = [0, 0], sizes = [8, 128], strides = [1, 1]} : vector<8x512xf32> to vector<8x128xf32>
    %142 = arith.negf %141 : vector<8x128xf32>
    %143 = math.exp %142 : vector<8x128xf32>
    %cst_43 = arith.constant 1.000000e+00 : f32
    %144 = vector.broadcast %cst_43 : f32 to vector<8x128xf32>
    %145 = arith.addf %144, %143 : vector<8x128xf32>
    %146 = arith.divf %144, %145 : vector<8x128xf32>
    %147 = vector.extract_strided_slice %140 {offsets = [0, 128], sizes = [8, 128], strides = [1, 1]} : vector<8x512xf32> to vector<8x128xf32>
    %148 = arith.negf %147 : vector<8x128xf32>
    %149 = math.exp %148 : vector<8x128xf32>
    %cst_44 = arith.constant 1.000000e+00 : f32
    %150 = vector.broadcast %cst_44 : f32 to vector<8x128xf32>
    %151 = arith.addf %150, %149 : vector<8x128xf32>
    %152 = arith.divf %150, %151 : vector<8x128xf32>
    %153 = vector.extract_strided_slice %140 {offsets = [0, 256], sizes = [8, 128], strides = [1, 1]} : vector<8x512xf32> to vector<8x128xf32>
    %154 = math.tanh %153 : vector<8x128xf32>
    %155 = vector.extract_strided_slice %140 {offsets = [0, 384], sizes = [8, 128], strides = [1, 1]} : vector<8x512xf32> to vector<8x128xf32>
    %156 = arith.negf %155 : vector<8x128xf32>
    %157 = math.exp %156 : vector<8x128xf32>
    %cst_45 = arith.constant 1.000000e+00 : f32
    %158 = vector.broadcast %cst_45 : f32 to vector<8x128xf32>
    %159 = arith.addf %158, %157 : vector<8x128xf32>
    %160 = arith.divf %158, %159 : vector<8x128xf32>
    %161 = arith.mulf %152, %119 : vector<8x128xf32>
    %162 = arith.mulf %146, %154 : vector<8x128xf32>
    %163 = arith.addf %161, %162 : vector<8x128xf32>
    %164 = math.tanh %163 : vector<8x128xf32>
    %165 = arith.mulf %160, %164 : vector<8x128xf32>
    %166 = vector.broadcast %133 : i32 to vector<8x1xi32>
    %167 = arith.cmpi slt, %166, %9 : vector<8x1xi32>
    %168 = vector.shape_cast %167 : vector<8x1xi1> to vector<8x1xi1>
    %169 = vector.broadcast %168 : vector<8x1xi1> to vector<8x128xi1>
    %170 = arith.select %169, %165, %116 : vector<8x128xi1>, vector<8x128xf32>
    %171 = vector.shape_cast %167 : vector<8x1xi1> to vector<8x1xi1>
    %172 = vector.broadcast %171 : vector<8x1xi1> to vector<8x128xi1>
    %173 = arith.select %172, %163, %119 : vector<8x128xi1>, vector<8x128xf32>
    %cst_46 = arith.constant 0.000000e+00 : f32
    %174 = vector.shape_cast %167 : vector<8x1xi1> to vector<8x1xi1>
    %175 = vector.broadcast %174 : vector<8x1xi1> to vector<8x128xi1>
    %176 = vector.broadcast %cst_46 : f32 to vector<8x128xf32>
    %177 = arith.select %175, %165, %176 : vector<8x128xi1>, vector<8x128xf32>
    %178 = arith.index_cast %132 : i32 to index
    %c0_47 = arith.constant 0 : index
    %c0_48 = arith.constant 0 : index
    %179 = vector.load %arg6[%178, %c0_47, %c0_48] : memref<8x8x128xf32, #tpu.memory_space<vmem>>, vector<1x8x128xf32>
    %180 = vector.shape_cast %179 : vector<1x8x128xf32> to vector<8x128xf32>
    %181 = vector.shape_cast %177 : vector<8x128xf32> to vector<1x8x128xf32>
    tpu.vector_store %arg6[%178, %c0_47, %c0_48], %181 {strides = array<i32>} : memref<8x8x128xf32, #tpu.memory_space<vmem>>, vector<1x8x128xf32>,
    %c3_i32 = arith.constant 3 : i32
    %c1_i32_49 = arith.constant 1 : i32
    %182 = arith.subi %c1_i32_49, %arg0 : i32
    %183 = arith.muli %182, %c3_i32 : i32
    %c7_i32_50 = arith.constant 7 : i32
    %184 = arith.subi %c7_i32_50, %c3_i32 : i32
    %185 = arith.muli %arg0, %184 : i32
    %186 = arith.addi %183, %185 : i32
    %187 = arith.addi %8, %186 : i32
    %c0_51 = arith.constant 0 : index
    %188 = arith.index_cast %186 : i32 to index
    %c0_52 = arith.constant 0 : index
    %c0_53 = arith.constant 0 : index
    %189 = vector.load %arg2[%c0_51, %188, %c0_52, %c0_53] : memref<1x8x8x512xf32, #tpu.memory_space<vmem>>, vector<1x1x8x512xf32>
    %190 = vector.shape_cast %189 : vector<1x1x8x512xf32> to vector<8x512xf32>
    %191 = vector.broadcast %11 : vector<1x512xf32> to vector<8x512xf32>
    %192 = arith.addf %190, %191 : vector<8x512xf32>
    %cst_54 = arith.constant dense<0.000000e+00> : vector<8x512xf32>
    %193 = tpu.matmul %170, %13, %cst_54 {dimension_numbers = #tpu.dot_dimension_numbers<[1], [0], [0], [1], [0, 0, 1, 1], [], []>} : vector<8x128xf32>, vector<128x512xf32>, vector<8x512xf32> -> vector<8x512xf32>
    %194 = arith.addf %192, %193 : vector<8x512xf32>
    %195 = vector.extract_strided_slice %194 {offsets = [0, 0], sizes = [8, 128], strides = [1, 1]} : vector<8x512xf32> to vector<8x128xf32>
    %196 = arith.negf %195 : vector<8x128xf32>
    %197 = math.exp %196 : vector<8x128xf32>
    %cst_55 = arith.constant 1.000000e+00 : f32
    %198 = vector.broadcast %cst_55 : f32 to vector<8x128xf32>
    %199 = arith.addf %198, %197 : vector<8x128xf32>
    %200 = arith.divf %198, %199 : vector<8x128xf32>
    %201 = vector.extract_strided_slice %194 {offsets = [0, 128], sizes = [8, 128], strides = [1, 1]} : vector<8x512xf32> to vector<8x128xf32>
    %202 = arith.negf %201 : vector<8x128xf32>
    %203 = math.exp %202 : vector<8x128xf32>
    %cst_56 = arith.constant 1.000000e+00 : f32
    %204 = vector.broadcast %cst_56 : f32 to vector<8x128xf32>
    %205 = arith.addf %204, %203 : vector<8x128xf32>
    %206 = arith.divf %204, %205 : vector<8x128xf32>
    %207 = vector.extract_strided_slice %194 {offsets = [0, 256], sizes = [8, 128], strides = [1, 1]} : vector<8x512xf32> to vector<8x128xf32>
    %208 = math.tanh %207 : vector<8x128xf32>
    %209 = vector.extract_strided_slice %194 {offsets = [0, 384], sizes = [8, 128], strides = [1, 1]} : vector<8x512xf32> to vector<8x128xf32>
    %210 = arith.negf %209 : vector<8x128xf32>
    %211 = math.exp %210 : vector<8x128xf32>
    %cst_57 = arith.constant 1.000000e+00 : f32
    %212 = vector.broadcast %cst_57 : f32 to vector<8x128xf32>
    %213 = arith.addf %212, %211 : vector<8x128xf32>
    %214 = arith.divf %212, %213 : vector<8x128xf32>
    %215 = arith.mulf %206, %173 : vector<8x128xf32>
    %216 = arith.mulf %200, %208 : vector<8x128xf32>
    %217 = arith.addf %215, %216 : vector<8x128xf32>
    %218 = math.tanh %217 : vector<8x128xf32>
    %219 = arith.mulf %214, %218 : vector<8x128xf32>
    %220 = vector.broadcast %187 : i32 to vector<8x1xi32>
    %221 = arith.cmpi slt, %220, %9 : vector<8x1xi32>
    %222 = vector.shape_cast %221 : vector<8x1xi1> to vector<8x1xi1>
    %223 = vector.broadcast %222 : vector<8x1xi1> to vector<8x128xi1>
    %224 = arith.select %223, %219, %170 : vector<8x128xi1>, vector<8x128xf32>
    %225 = vector.shape_cast %221 : vector<8x1xi1> to vector<8x1xi1>
    %226 = vector.broadcast %225 : vector<8x1xi1> to vector<8x128xi1>
    %227 = arith.select %226, %217, %173 : vector<8x128xi1>, vector<8x128xf32>
    %cst_58 = arith.constant 0.000000e+00 : f32
    %228 = vector.shape_cast %221 : vector<8x1xi1> to vector<8x1xi1>
    %229 = vector.broadcast %228 : vector<8x1xi1> to vector<8x128xi1>
    %230 = vector.broadcast %cst_58 : f32 to vector<8x128xf32>
    %231 = arith.select %229, %219, %230 : vector<8x128xi1>, vector<8x128xf32>
    %232 = arith.index_cast %186 : i32 to index
    %c0_59 = arith.constant 0 : index
    %c0_60 = arith.constant 0 : index
    %233 = vector.load %arg6[%232, %c0_59, %c0_60] : memref<8x8x128xf32, #tpu.memory_space<vmem>>, vector<1x8x128xf32>
    %234 = vector.shape_cast %233 : vector<1x8x128xf32> to vector<8x128xf32>
    %235 = vector.shape_cast %231 : vector<8x128xf32> to vector<1x8x128xf32>
    tpu.vector_store %arg6[%232, %c0_59, %c0_60], %235 {strides = array<i32>} : memref<8x8x128xf32, #tpu.memory_space<vmem>>, vector<1x8x128xf32>,
    %c4_i32 = arith.constant 4 : i32
    %c1_i32_61 = arith.constant 1 : i32
    %236 = arith.subi %c1_i32_61, %arg0 : i32
    %237 = arith.muli %236, %c4_i32 : i32
    %c7_i32_62 = arith.constant 7 : i32
    %238 = arith.subi %c7_i32_62, %c4_i32 : i32
    %239 = arith.muli %arg0, %238 : i32
    %240 = arith.addi %237, %239 : i32
    %241 = arith.addi %8, %240 : i32
    %c0_63 = arith.constant 0 : index
    %242 = arith.index_cast %240 : i32 to index
    %c0_64 = arith.constant 0 : index
    %c0_65 = arith.constant 0 : index
    %243 = vector.load %arg2[%c0_63, %242, %c0_64, %c0_65] : memref<1x8x8x512xf32, #tpu.memory_space<vmem>>, vector<1x1x8x512xf32>
    %244 = vector.shape_cast %243 : vector<1x1x8x512xf32> to vector<8x512xf32>
    %245 = vector.broadcast %11 : vector<1x512xf32> to vector<8x512xf32>
    %246 = arith.addf %244, %245 : vector<8x512xf32>
    %cst_66 = arith.constant dense<0.000000e+00> : vector<8x512xf32>
    %247 = tpu.matmul %224, %13, %cst_66 {dimension_numbers = #tpu.dot_dimension_numbers<[1], [0], [0], [1], [0, 0, 1, 1], [], []>} : vector<8x128xf32>, vector<128x512xf32>, vector<8x512xf32> -> vector<8x512xf32>
    %248 = arith.addf %246, %247 : vector<8x512xf32>
    %249 = vector.extract_strided_slice %248 {offsets = [0, 0], sizes = [8, 128], strides = [1, 1]} : vector<8x512xf32> to vector<8x128xf32>
    %250 = arith.negf %249 : vector<8x128xf32>
    %251 = math.exp %250 : vector<8x128xf32>
    %cst_67 = arith.constant 1.000000e+00 : f32
    %252 = vector.broadcast %cst_67 : f32 to vector<8x128xf32>
    %253 = arith.addf %252, %251 : vector<8x128xf32>
    %254 = arith.divf %252, %253 : vector<8x128xf32>
    %255 = vector.extract_strided_slice %248 {offsets = [0, 128], sizes = [8, 128], strides = [1, 1]} : vector<8x512xf32> to vector<8x128xf32>
    %256 = arith.negf %255 : vector<8x128xf32>
    %257 = math.exp %256 : vector<8x128xf32>
    %cst_68 = arith.constant 1.000000e+00 : f32
    %258 = vector.broadcast %cst_68 : f32 to vector<8x128xf32>
    %259 = arith.addf %258, %257 : vector<8x128xf32>
    %260 = arith.divf %258, %259 : vector<8x128xf32>
    %261 = vector.extract_strided_slice %248 {offsets = [0, 256], sizes = [8, 128], strides = [1, 1]} : vector<8x512xf32> to vector<8x128xf32>
    %262 = math.tanh %261 : vector<8x128xf32>
    %263 = vector.extract_strided_slice %248 {offsets = [0, 384], sizes = [8, 128], strides = [1, 1]} : vector<8x512xf32> to vector<8x128xf32>
    %264 = arith.negf %263 : vector<8x128xf32>
    %265 = math.exp %264 : vector<8x128xf32>
    %cst_69 = arith.constant 1.000000e+00 : f32
    %266 = vector.broadcast %cst_69 : f32 to vector<8x128xf32>
    %267 = arith.addf %266, %265 : vector<8x128xf32>
    %268 = arith.divf %266, %267 : vector<8x128xf32>
    %269 = arith.mulf %260, %227 : vector<8x128xf32>
    %270 = arith.mulf %254, %262 : vector<8x128xf32>
    %271 = arith.addf %269, %270 : vector<8x128xf32>
    %272 = math.tanh %271 : vector<8x128xf32>
    %273 = arith.mulf %268, %272 : vector<8x128xf32>
    %274 = vector.broadcast %241 : i32 to vector<8x1xi32>
    %275 = arith.cmpi slt, %274, %9 : vector<8x1xi32>
    %276 = vector.shape_cast %275 : vector<8x1xi1> to vector<8x1xi1>
    %277 = vector.broadcast %276 : vector<8x1xi1> to vector<8x128xi1>
    %278 = arith.select %277, %273, %224 : vector<8x128xi1>, vector<8x128xf32>
    %279 = vector.shape_cast %275 : vector<8x1xi1> to vector<8x1xi1>
    %280 = vector.broadcast %279 : vector<8x1xi1> to vector<8x128xi1>
    %281 = arith.select %280, %271, %227 : vector<8x128xi1>, vector<8x128xf32>
    %cst_70 = arith.constant 0.000000e+00 : f32
    %282 = vector.shape_cast %275 : vector<8x1xi1> to vector<8x1xi1>
    %283 = vector.broadcast %282 : vector<8x1xi1> to vector<8x128xi1>
    %284 = vector.broadcast %cst_70 : f32 to vector<8x128xf32>
    %285 = arith.select %283, %273, %284 : vector<8x128xi1>, vector<8x128xf32>
    %286 = arith.index_cast %240 : i32 to index
    %c0_71 = arith.constant 0 : index
    %c0_72 = arith.constant 0 : index
    %287 = vector.load %arg6[%286, %c0_71, %c0_72] : memref<8x8x128xf32, #tpu.memory_space<vmem>>, vector<1x8x128xf32>
    %288 = vector.shape_cast %287 : vector<1x8x128xf32> to vector<8x128xf32>
    %289 = vector.shape_cast %285 : vector<8x128xf32> to vector<1x8x128xf32>
    tpu.vector_store %arg6[%286, %c0_71, %c0_72], %289 {strides = array<i32>} : memref<8x8x128xf32, #tpu.memory_space<vmem>>, vector<1x8x128xf32>,
    %c5_i32 = arith.constant 5 : i32
    %c1_i32_73 = arith.constant 1 : i32
    %290 = arith.subi %c1_i32_73, %arg0 : i32
    %291 = arith.muli %290, %c5_i32 : i32
    %c7_i32_74 = arith.constant 7 : i32
    %292 = arith.subi %c7_i32_74, %c5_i32 : i32
    %293 = arith.muli %arg0, %292 : i32
    %294 = arith.addi %291, %293 : i32
    %295 = arith.addi %8, %294 : i32
    %c0_75 = arith.constant 0 : index
    %296 = arith.index_cast %294 : i32 to index
    %c0_76 = arith.constant 0 : index
    %c0_77 = arith.constant 0 : index
    %297 = vector.load %arg2[%c0_75, %296, %c0_76, %c0_77] : memref<1x8x8x512xf32, #tpu.memory_space<vmem>>, vector<1x1x8x512xf32>
    %298 = vector.shape_cast %297 : vector<1x1x8x512xf32> to vector<8x512xf32>
    %299 = vector.broadcast %11 : vector<1x512xf32> to vector<8x512xf32>
    %300 = arith.addf %298, %299 : vector<8x512xf32>
    %cst_78 = arith.constant dense<0.000000e+00> : vector<8x512xf32>
    %301 = tpu.matmul %278, %13, %cst_78 {dimension_numbers = #tpu.dot_dimension_numbers<[1], [0], [0], [1], [0, 0, 1, 1], [], []>} : vector<8x128xf32>, vector<128x512xf32>, vector<8x512xf32> -> vector<8x512xf32>
    %302 = arith.addf %300, %301 : vector<8x512xf32>
    %303 = vector.extract_strided_slice %302 {offsets = [0, 0], sizes = [8, 128], strides = [1, 1]} : vector<8x512xf32> to vector<8x128xf32>
    %304 = arith.negf %303 : vector<8x128xf32>
    %305 = math.exp %304 : vector<8x128xf32>
    %cst_79 = arith.constant 1.000000e+00 : f32
    %306 = vector.broadcast %cst_79 : f32 to vector<8x128xf32>
    %307 = arith.addf %306, %305 : vector<8x128xf32>
    %308 = arith.divf %306, %307 : vector<8x128xf32>
    %309 = vector.extract_strided_slice %302 {offsets = [0, 128], sizes = [8, 128], strides = [1, 1]} : vector<8x512xf32> to vector<8x128xf32>
    %310 = arith.negf %309 : vector<8x128xf32>
    %311 = math.exp %310 : vector<8x128xf32>
    %cst_80 = arith.constant 1.000000e+00 : f32
    %312 = vector.broadcast %cst_80 : f32 to vector<8x128xf32>
    %313 = arith.addf %312, %311 : vector<8x128xf32>
    %314 = arith.divf %312, %313 : vector<8x128xf32>
    %315 = vector.extract_strided_slice %302 {offsets = [0, 256], sizes = [8, 128], strides = [1, 1]} : vector<8x512xf32> to vector<8x128xf32>
    %316 = math.tanh %315 : vector<8x128xf32>
    %317 = vector.extract_strided_slice %302 {offsets = [0, 384], sizes = [8, 128], strides = [1, 1]} : vector<8x512xf32> to vector<8x128xf32>
    %318 = arith.negf %317 : vector<8x128xf32>
    %319 = math.exp %318 : vector<8x128xf32>
    %cst_81 = arith.constant 1.000000e+00 : f32
    %320 = vector.broadcast %cst_81 : f32 to vector<8x128xf32>
    %321 = arith.addf %320, %319 : vector<8x128xf32>
    %322 = arith.divf %320, %321 : vector<8x128xf32>
    %323 = arith.mulf %314, %281 : vector<8x128xf32>
    %324 = arith.mulf %308, %316 : vector<8x128xf32>
    %325 = arith.addf %323, %324 : vector<8x128xf32>
    %326 = math.tanh %325 : vector<8x128xf32>
    %327 = arith.mulf %322, %326 : vector<8x128xf32>
    %328 = vector.broadcast %295 : i32 to vector<8x1xi32>
    %329 = arith.cmpi slt, %328, %9 : vector<8x1xi32>
    %330 = vector.shape_cast %329 : vector<8x1xi1> to vector<8x1xi1>
    %331 = vector.broadcast %330 : vector<8x1xi1> to vector<8x128xi1>
    %332 = arith.select %331, %327, %278 : vector<8x128xi1>, vector<8x128xf32>
    %333 = vector.shape_cast %329 : vector<8x1xi1> to vector<8x1xi1>
    %334 = vector.broadcast %333 : vector<8x1xi1> to vector<8x128xi1>
    %335 = arith.select %334, %325, %281 : vector<8x128xi1>, vector<8x128xf32>
    %cst_82 = arith.constant 0.000000e+00 : f32
    %336 = vector.shape_cast %329 : vector<8x1xi1> to vector<8x1xi1>
    %337 = vector.broadcast %336 : vector<8x1xi1> to vector<8x128xi1>
    %338 = vector.broadcast %cst_82 : f32 to vector<8x128xf32>
    %339 = arith.select %337, %327, %338 : vector<8x128xi1>, vector<8x128xf32>
    %340 = arith.index_cast %294 : i32 to index
    %c0_83 = arith.constant 0 : index
    %c0_84 = arith.constant 0 : index
    %341 = vector.load %arg6[%340, %c0_83, %c0_84] : memref<8x8x128xf32, #tpu.memory_space<vmem>>, vector<1x8x128xf32>
    %342 = vector.shape_cast %341 : vector<1x8x128xf32> to vector<8x128xf32>
    %343 = vector.shape_cast %339 : vector<8x128xf32> to vector<1x8x128xf32>
    tpu.vector_store %arg6[%340, %c0_83, %c0_84], %343 {strides = array<i32>} : memref<8x8x128xf32, #tpu.memory_space<vmem>>, vector<1x8x128xf32>,
    %c6_i32 = arith.constant 6 : i32
    %c1_i32_85 = arith.constant 1 : i32
    %344 = arith.subi %c1_i32_85, %arg0 : i32
    %345 = arith.muli %344, %c6_i32 : i32
    %c7_i32_86 = arith.constant 7 : i32
    %346 = arith.subi %c7_i32_86, %c6_i32 : i32
    %347 = arith.muli %arg0, %346 : i32
    %348 = arith.addi %345, %347 : i32
    %349 = arith.addi %8, %348 : i32
    %c0_87 = arith.constant 0 : index
    %350 = arith.index_cast %348 : i32 to index
    %c0_88 = arith.constant 0 : index
    %c0_89 = arith.constant 0 : index
    %351 = vector.load %arg2[%c0_87, %350, %c0_88, %c0_89] : memref<1x8x8x512xf32, #tpu.memory_space<vmem>>, vector<1x1x8x512xf32>
    %352 = vector.shape_cast %351 : vector<1x1x8x512xf32> to vector<8x512xf32>
    %353 = vector.broadcast %11 : vector<1x512xf32> to vector<8x512xf32>
    %354 = arith.addf %352, %353 : vector<8x512xf32>
    %cst_90 = arith.constant dense<0.000000e+00> : vector<8x512xf32>
    %355 = tpu.matmul %332, %13, %cst_90 {dimension_numbers = #tpu.dot_dimension_numbers<[1], [0], [0], [1], [0, 0, 1, 1], [], []>} : vector<8x128xf32>, vector<128x512xf32>, vector<8x512xf32> -> vector<8x512xf32>
    %356 = arith.addf %354, %355 : vector<8x512xf32>
    %357 = vector.extract_strided_slice %356 {offsets = [0, 0], sizes = [8, 128], strides = [1, 1]} : vector<8x512xf32> to vector<8x128xf32>
    %358 = arith.negf %357 : vector<8x128xf32>
    %359 = math.exp %358 : vector<8x128xf32>
    %cst_91 = arith.constant 1.000000e+00 : f32
    %360 = vector.broadcast %cst_91 : f32 to vector<8x128xf32>
    %361 = arith.addf %360, %359 : vector<8x128xf32>
    %362 = arith.divf %360, %361 : vector<8x128xf32>
    %363 = vector.extract_strided_slice %356 {offsets = [0, 128], sizes = [8, 128], strides = [1, 1]} : vector<8x512xf32> to vector<8x128xf32>
    %364 = arith.negf %363 : vector<8x128xf32>
    %365 = math.exp %364 : vector<8x128xf32>
    %cst_92 = arith.constant 1.000000e+00 : f32
    %366 = vector.broadcast %cst_92 : f32 to vector<8x128xf32>
    %367 = arith.addf %366, %365 : vector<8x128xf32>
    %368 = arith.divf %366, %367 : vector<8x128xf32>
    %369 = vector.extract_strided_slice %356 {offsets = [0, 256], sizes = [8, 128], strides = [1, 1]} : vector<8x512xf32> to vector<8x128xf32>
    %370 = math.tanh %369 : vector<8x128xf32>
    %371 = vector.extract_strided_slice %356 {offsets = [0, 384], sizes = [8, 128], strides = [1, 1]} : vector<8x512xf32> to vector<8x128xf32>
    %372 = arith.negf %371 : vector<8x128xf32>
    %373 = math.exp %372 : vector<8x128xf32>
    %cst_93 = arith.constant 1.000000e+00 : f32
    %374 = vector.broadcast %cst_93 : f32 to vector<8x128xf32>
    %375 = arith.addf %374, %373 : vector<8x128xf32>
    %376 = arith.divf %374, %375 : vector<8x128xf32>
    %377 = arith.mulf %368, %335 : vector<8x128xf32>
    %378 = arith.mulf %362, %370 : vector<8x128xf32>
    %379 = arith.addf %377, %378 : vector<8x128xf32>
    %380 = math.tanh %379 : vector<8x128xf32>
    %381 = arith.mulf %376, %380 : vector<8x128xf32>
    %382 = vector.broadcast %349 : i32 to vector<8x1xi32>
    %383 = arith.cmpi slt, %382, %9 : vector<8x1xi32>
    %384 = vector.shape_cast %383 : vector<8x1xi1> to vector<8x1xi1>
    %385 = vector.broadcast %384 : vector<8x1xi1> to vector<8x128xi1>
    %386 = arith.select %385, %381, %332 : vector<8x128xi1>, vector<8x128xf32>
    %387 = vector.shape_cast %383 : vector<8x1xi1> to vector<8x1xi1>
    %388 = vector.broadcast %387 : vector<8x1xi1> to vector<8x128xi1>
    %389 = arith.select %388, %379, %335 : vector<8x128xi1>, vector<8x128xf32>
    %cst_94 = arith.constant 0.000000e+00 : f32
    %390 = vector.shape_cast %383 : vector<8x1xi1> to vector<8x1xi1>
    %391 = vector.broadcast %390 : vector<8x1xi1> to vector<8x128xi1>
    %392 = vector.broadcast %cst_94 : f32 to vector<8x128xf32>
    %393 = arith.select %391, %381, %392 : vector<8x128xi1>, vector<8x128xf32>
    %394 = arith.index_cast %348 : i32 to index
    %c0_95 = arith.constant 0 : index
    %c0_96 = arith.constant 0 : index
    %395 = vector.load %arg6[%394, %c0_95, %c0_96] : memref<8x8x128xf32, #tpu.memory_space<vmem>>, vector<1x8x128xf32>
    %396 = vector.shape_cast %395 : vector<1x8x128xf32> to vector<8x128xf32>
    %397 = vector.shape_cast %393 : vector<8x128xf32> to vector<1x8x128xf32>
    tpu.vector_store %arg6[%394, %c0_95, %c0_96], %397 {strides = array<i32>} : memref<8x8x128xf32, #tpu.memory_space<vmem>>, vector<1x8x128xf32>,
    %c7_i32_97 = arith.constant 7 : i32
    %c1_i32_98 = arith.constant 1 : i32
    %398 = arith.subi %c1_i32_98, %arg0 : i32
    %399 = arith.muli %398, %c7_i32_97 : i32
    %c7_i32_99 = arith.constant 7 : i32
    %400 = arith.subi %c7_i32_99, %c7_i32_97 : i32
    %401 = arith.muli %arg0, %400 : i32
    %402 = arith.addi %399, %401 : i32
    %403 = arith.addi %8, %402 : i32
    %c0_100 = arith.constant 0 : index
    %404 = arith.index_cast %402 : i32 to index
    %c0_101 = arith.constant 0 : index
    %c0_102 = arith.constant 0 : index
    %405 = vector.load %arg2[%c0_100, %404, %c0_101, %c0_102] : memref<1x8x8x512xf32, #tpu.memory_space<vmem>>, vector<1x1x8x512xf32>
    %406 = vector.shape_cast %405 : vector<1x1x8x512xf32> to vector<8x512xf32>
    %407 = vector.broadcast %11 : vector<1x512xf32> to vector<8x512xf32>
    %408 = arith.addf %406, %407 : vector<8x512xf32>
    %cst_103 = arith.constant dense<0.000000e+00> : vector<8x512xf32>
    %409 = tpu.matmul %386, %13, %cst_103 {dimension_numbers = #tpu.dot_dimension_numbers<[1], [0], [0], [1], [0, 0, 1, 1], [], []>} : vector<8x128xf32>, vector<128x512xf32>, vector<8x512xf32> -> vector<8x512xf32>
    %410 = arith.addf %408, %409 : vector<8x512xf32>
    %411 = vector.extract_strided_slice %410 {offsets = [0, 0], sizes = [8, 128], strides = [1, 1]} : vector<8x512xf32> to vector<8x128xf32>
    %412 = arith.negf %411 : vector<8x128xf32>
    %413 = math.exp %412 : vector<8x128xf32>
    %cst_104 = arith.constant 1.000000e+00 : f32
    %414 = vector.broadcast %cst_104 : f32 to vector<8x128xf32>
    %415 = arith.addf %414, %413 : vector<8x128xf32>
    %416 = arith.divf %414, %415 : vector<8x128xf32>
    %417 = vector.extract_strided_slice %410 {offsets = [0, 128], sizes = [8, 128], strides = [1, 1]} : vector<8x512xf32> to vector<8x128xf32>
    %418 = arith.negf %417 : vector<8x128xf32>
    %419 = math.exp %418 : vector<8x128xf32>
    %cst_105 = arith.constant 1.000000e+00 : f32
    %420 = vector.broadcast %cst_105 : f32 to vector<8x128xf32>
    %421 = arith.addf %420, %419 : vector<8x128xf32>
    %422 = arith.divf %420, %421 : vector<8x128xf32>
    %423 = vector.extract_strided_slice %410 {offsets = [0, 256], sizes = [8, 128], strides = [1, 1]} : vector<8x512xf32> to vector<8x128xf32>
    %424 = math.tanh %423 : vector<8x128xf32>
    %425 = vector.extract_strided_slice %410 {offsets = [0, 384], sizes = [8, 128], strides = [1, 1]} : vector<8x512xf32> to vector<8x128xf32>
    %426 = arith.negf %425 : vector<8x128xf32>
    %427 = math.exp %426 : vector<8x128xf32>
    %cst_106 = arith.constant 1.000000e+00 : f32
    %428 = vector.broadcast %cst_106 : f32 to vector<8x128xf32>
    %429 = arith.addf %428, %427 : vector<8x128xf32>
    %430 = arith.divf %428, %429 : vector<8x128xf32>
    %431 = arith.mulf %422, %389 : vector<8x128xf32>
    %432 = arith.mulf %416, %424 : vector<8x128xf32>
    %433 = arith.addf %431, %432 : vector<8x128xf32>
    %434 = math.tanh %433 : vector<8x128xf32>
    %435 = arith.mulf %430, %434 : vector<8x128xf32>
    %436 = vector.broadcast %403 : i32 to vector<8x1xi32>
    %437 = arith.cmpi slt, %436, %9 : vector<8x1xi32>
    %438 = vector.shape_cast %437 : vector<8x1xi1> to vector<8x1xi1>
    %439 = vector.broadcast %438 : vector<8x1xi1> to vector<8x128xi1>
    %440 = arith.select %439, %435, %386 : vector<8x128xi1>, vector<8x128xf32>
    %441 = vector.shape_cast %437 : vector<8x1xi1> to vector<8x1xi1>
    %442 = vector.broadcast %441 : vector<8x1xi1> to vector<8x128xi1>
    %443 = arith.select %442, %433, %389 : vector<8x128xi1>, vector<8x128xf32>
    %cst_107 = arith.constant 0.000000e+00 : f32
    %444 = vector.shape_cast %437 : vector<8x1xi1> to vector<8x1xi1>
    %445 = vector.broadcast %444 : vector<8x1xi1> to vector<8x128xi1>
    %446 = vector.broadcast %cst_107 : f32 to vector<8x128xf32>
    %447 = arith.select %445, %435, %446 : vector<8x128xi1>, vector<8x128xf32>
    %448 = arith.index_cast %402 : i32 to index
    %c0_108 = arith.constant 0 : index
    %c0_109 = arith.constant 0 : index
    %449 = vector.load %arg6[%448, %c0_108, %c0_109] : memref<8x8x128xf32, #tpu.memory_space<vmem>>, vector<1x8x128xf32>
    %450 = vector.shape_cast %449 : vector<1x8x128xf32> to vector<8x128xf32>
    %451 = vector.shape_cast %447 : vector<8x128xf32> to vector<1x8x128xf32>
    tpu.vector_store %arg6[%448, %c0_108, %c0_109], %451 {strides = array<i32>} : memref<8x8x128xf32, #tpu.memory_space<vmem>>, vector<1x8x128xf32>,
    %c8_i32_110 = arith.constant 8 : i32
    %452 = arith.index_cast %arg0 : i32 to index
    %c0_111 = arith.constant 0 : index
    %c0_112 = arith.constant 0 : index
    %453 = vector.load %arg7[%452, %c0_111, %c0_112] : memref<2x8x128xf32, #tpu.memory_space<vmem>>, vector<1x8x128xf32>
    %454 = vector.shape_cast %453 : vector<1x8x128xf32> to vector<8x128xf32>
    %455 = vector.shape_cast %440 : vector<8x128xf32> to vector<1x8x128xf32>
    tpu.vector_store %arg7[%452, %c0_111, %c0_112], %455 {strides = array<i32>} : memref<2x8x128xf32, #tpu.memory_space<vmem>>, vector<1x8x128xf32>,
    %456 = arith.index_cast %arg0 : i32 to index
    %c0_113 = arith.constant 0 : index
    %c0_114 = arith.constant 0 : index
    %457 = vector.load %arg8[%456, %c0_113, %c0_114] : memref<2x8x128xf32, #tpu.memory_space<vmem>>, vector<1x8x128xf32>
    %458 = vector.shape_cast %457 : vector<1x8x128xf32> to vector<8x128xf32>
    %459 = vector.shape_cast %443 : vector<8x128xf32> to vector<1x8x128xf32>
    tpu.vector_store %arg8[%456, %c0_113, %c0_114], %459 {strides = array<i32>} : memref<2x8x128xf32, #tpu.memory_space<vmem>>, vector<1x8x128xf32>,
    return
  }
  func.func @transform_0(%arg0: i32, %arg1: i32) -> (i32, i32, i32, i32) {
    %c1_i32 = arith.constant 1 : i32
    %0 = arith.subi %c1_i32, %arg0 : i32
    %1 = arith.muli %0, %arg1 : i32
    %c0_i32 = arith.constant 0 : i32
    %2 = arith.subi %c0_i32, %arg1 : i32
    %3 = arith.muli %arg0, %2 : i32
    %4 = arith.addi %1, %3 : i32
    %c0_i32_0 = arith.constant 0 : i32
    %c0_i32_1 = arith.constant 0 : i32
    %c0_i32_2 = arith.constant 0 : i32
    return %arg0, %4, %c0_i32_0, %c0_i32_1 : i32, i32, i32, i32
  }
  func.func @transform_1(%arg0: i32, %arg1: i32) -> (i32, i32, i32) {
    %c0_i32 = arith.constant 0 : i32
    %c0_i32_0 = arith.constant 0 : i32
    %c0_i32_1 = arith.constant 0 : i32
    return %arg0, %c0_i32, %c0_i32_0 : i32, i32, i32
  }
  func.func @transform_2(%arg0: i32, %arg1: i32) -> (i32, i32, i32) {
    %c0_i32 = arith.constant 0 : i32
    %c0_i32_0 = arith.constant 0 : i32
    %c0_i32_1 = arith.constant 0 : i32
    return %arg0, %c0_i32, %c0_i32_0 : i32, i32, i32
  }
  func.func @transform_3(%arg0: i32, %arg1: i32) -> (i32, i32) {
    %c0_i32 = arith.constant 0 : i32
    %c0_i32_0 = arith.constant 0 : i32
    %c0_i32_1 = arith.constant 0 : i32
    return %c0_i32, %c0_i32_0 : i32, i32
  }
  func.func @transform_4(%arg0: i32, %arg1: i32) -> (i32, i32, i32) {
    %c1_i32 = arith.constant 1 : i32
    %0 = arith.subi %c1_i32, %arg0 : i32
    %1 = arith.muli %0, %arg1 : i32
    %c0_i32 = arith.constant 0 : i32
    %2 = arith.subi %c0_i32, %arg1 : i32
    %3 = arith.muli %arg0, %2 : i32
    %4 = arith.addi %1, %3 : i32
    %c0_i32_0 = arith.constant 0 : i32
    %c0_i32_1 = arith.constant 0 : i32
    return %4, %c0_i32_0, %arg0 : i32, i32, i32
  }
}

</mosaic_0001>

<llo_original>
// kernel: _bilstm_full.1
$region0: #{_bilstm_full.1}
  #allocation0 [shape = 'u32[]', space=smem, size = 0x4, offset = 0x4, fixed_abs, tag = 'smem constant byte address 0x4 - core index']
  #allocation1 [shape = 'u32[72,128]{1,0:T(1,128)}', space=vmem, size = 0x9000, scoped, tag = 'internal scratch']
  #allocation2 [shape = 'f32[2,8,128]{2,1,0:T(8,128)}', space=vmem, size = 0x2000, scoped, tag = 'scratch operand']
  #allocation3 [shape = 'f32[2,8,128]{2,1,0:T(8,128)}', space=vmem, size = 0x2000, scoped, tag = 'scratch operand']
  %s0 = inlined_call_operand.vmem [shape: f32[2,8,8,512], index: 0, kind: input, shape index: {}]
  %s1 = inlined_call_operand.vmem [shape: f32[2,128,512], index: 1, kind: input, shape index: {}]
  %s2 = inlined_call_operand.vmem [shape: f32[2,1,512], index: 2, kind: input, shape index: {}]
  %s3 = inlined_call_operand.vmem [shape: s32[8,1], index: 3, kind: input, shape index: {}]
  %s4 = inlined_call_operand.vmem [shape: f32[8,8,256], index: 4, kind: output, shape index: {}]
  %s5 = sld [smem:[#allocation0]]
  $region87: #{_bilstm_full.1} parent=0
    _
  %s7 = ssub.s32 1, %s5
  %s8 = scalar_select 0, %s7, %s5
  $region1: #{_bilstm_full.1} parent=0
    #allocation4 [shape = 'u8[65536]{0}', space=vmem, size = 0x10000, scoped, tag = 'output window, operand 0']
    loop: start=0, step=1, limit=4
    $region2: #{_bilstm_full.1} parent=1 // loop_pre_header
      _
    $region3: #{_bilstm_full.1} parent=1 // loop_header
      %s10 = sphi 0, %s14
      %p11 = scmp.ge.s32.totalorder %s10, 4
      %s17 = sphi 0, %s29
      %s18 = sphi 0, %s25
      %s19 = sphi 0, %s17
      %s20 = sphi 0, %s18
      %s21 = sphi 0, %s19
      %s22 = sphi 0, %s20
      %s44 = sphi 0, %s46
      %s47 = sphi 0, %s44
      %s48 = sphi 0, %s47
      %s64 = sphi 0, %s48
      %s70 = sphi 0, %s72
      %s73 = sphi 0, %s70
      %s74 = sphi 0, %s73
      %s90 = sphi 0, %s74
      %s96 = sphi 0, %s98
      %s99 = sphi 0, %s96
      %s100 = sphi 0, %s99
      %s116 = sphi 0, %s100
      %s120 = sphi 0, %s120
      %s122 = sphi 0, %s120
      %s123 = sphi 0, %s122
      %s137 = sphi 0, %s123
      %s155 = sphi 0, %s157
      %s158 = sphi 0, %s155
      %s159 = sphi 0, %s158
      %s175 = sphi 0, %s159
    $region4: #{_bilstm_full.1} parent=1 // loop_header_branch
      %13 = sbr.rel (%p11) target = $region8
    $region5: #{_bilstm_full.1} parent=1 // loop_body
      %s15 = ssub.s32 %s10, 1
      %s16 = ssub.s32 %s10, 2
      %s23 = sadd.s32 1, %s18
      %p24 = scmp.ge.s32.totalorder %s23, 1
      %s25 = scalar_select %p24, 0, %s23
      %s26 = sadd.s32 1, %s17
      %s27 = scalar_select %p24, %s26, %s17
      %p28 = scmp.ge.s32.totalorder %s27, 2
      %s29 = scalar_select %p28, 0, %s27
      %s30 = ssub.s32 1, %s17
      %s31 = smul.u32 %s30, %s18
      %s32 = ssub.s32 0, %s18
      %s33 = smul.u32 %s17, %s32
      %s34 = sadd.s32 %s31, %s33
      %s35 = ssub.s32 1, %s29
      %s36 = smul.u32 %s35, %s25
      %s37 = ssub.s32 0, %s25
      %s38 = smul.u32 %s29, %s37
      %s39 = sadd.s32 %s36, %s38
      %s40 = ssub.s32 %s17, %s29
      %s41 = ssub.s32 %s34, %s39
      %s42 = sor.u32 %s40, %s41
      %p43 = scmp.eq.s32.totalorder %s42, 0
      %s45 = sadd.s32 %s44, 1
      %s46 = scalar_select %p43, %s44, %s45
      %p49 = pneg %p43
      %p50 = scmp.eq.s32.totalorder %s10, 1
      %p51 = por %p49, %p50
      %p52 = scmp.ne.s32.totalorder %s44, %s47
      %p53 = scmp.eq.s32.totalorder %s10, 0
      %p54 = por %p52, %p53
      %p55 = scmp.ne.s32.totalorder %s44, %s47
      %p56 = scmp.eq.s32.totalorder %s15, 1
      %p57 = por %p55, %p56
      %p58 = scmp.ne.s32.totalorder %s47, %s48
      %p59 = scmp.eq.s32.totalorder %s15, 0
      %p60 = por %p58, %p59
      %p61 = scmp.ne.s32.totalorder %s47, %s48
      %p62 = scmp.eq.s32.totalorder %s16, 1
      %p63 = por %p61, %p62
      %p65 = scmp.ne.s32.totalorder %s48, %s64
      %p66 = scmp.eq.s32.totalorder %s16, 0
      %p67 = por %p65, %p66
      %s68 = ssub.s32 %s17, %s29
      %p69 = scmp.eq.s32.totalorder %s68, 0
      %s71 = sadd.s32 %s70, 1
      %s72 = scalar_select %p69, %s70, %s71
      %p75 = pneg %p69
      %p76 = scmp.eq.s32.totalorder %s10, 1
      %p77 = por %p75, %p76
      %p78 = scmp.ne.s32.totalorder %s70, %s73
      %p79 = scmp.eq.s32.totalorder %s10, 0
      %p80 = por %p78, %p79
      %p81 = scmp.ne.s32.totalorder %s70, %s73
      %p82 = scmp.eq.s32.totalorder %s15, 1
      %p83 = por %p81, %p82
      %p84 = scmp.ne.s32.totalorder %s73, %s74
      %p85 = scmp.eq.s32.totalorder %s15, 0
      %p86 = por %p84, %p85
      %p87 = scmp.ne.s32.totalorder %s73, %s74
      %p88 = scmp.eq.s32.totalorder %s16, 1
      %p89 = por %p87, %p88
      %p91 = scmp.ne.s32.totalorder %s74, %s90
      %p92 = scmp.eq.s32.totalorder %s16, 0
      %p93 = por %p91, %p92
      %s94 = ssub.s32 %s17, %s29
      %p95 = scmp.eq.s32.totalorder %s94, 0
      %s97 = sadd.s32 %s96, 1
      %s98 = scalar_select %p95, %s96, %s97
      %p101 = pneg %p95
      %p102 = scmp.eq.s32.totalorder %s10, 1
      %p103 = por %p101, %p102
      %p104 = scmp.ne.s32.totalorder %s96, %s99
      %p105 = scmp.eq.s32.totalorder %s10, 0
      %p106 = por %p104, %p105
      %p107 = scmp.ne.s32.totalorder %s96, %s99
      %p108 = scmp.eq.s32.totalorder %s15, 1
      %p109 = por %p107, %p108
      %p110 = scmp.ne.s32.totalorder %s99, %s100
      %p111 = scmp.eq.s32.totalorder %s15, 0
      %p112 = por %p110, %p111
      %p113 = scmp.ne.s32.totalorder %s99, %s100
      %p114 = scmp.eq.s32.totalorder %s16, 1
      %p115 = por %p113, %p114
      %p117 = scmp.ne.s32.totalorder %s100, %s116
      %p118 = scmp.eq.s32.totalorder %s16, 0
      %p119 = por %p117, %p118
      %s121 = sadd.s32 %s120, 1
      %p124 = scmp.eq.s32.totalorder %s10, 1
      %p125 = scmp.ne.s32.totalorder %s120, %s122
      %p126 = scmp.eq.s32.totalorder %s10, 0
      %p127 = por %p125, %p126
      %p128 = scmp.ne.s32.totalorder %s120, %s122
      %p129 = scmp.eq.s32.totalorder %s15, 1
      %p130 = por %p128, %p129
      %p131 = scmp.ne.s32.totalorder %s122, %s123
      %p132 = scmp.eq.s32.totalorder %s15, 0
      %p133 = por %p131, %p132
      %p134 = scmp.ne.s32.totalorder %s122, %s123
      %p135 = scmp.eq.s32.totalorder %s16, 1
      %p136 = por %p134, %p135
      %p138 = scmp.ne.s32.totalorder %s123, %s137
      %p139 = scmp.eq.s32.totalorder %s16, 0
      %p140 = por %p138, %p139
      %s141 = ssub.s32 1, %s17
      %s142 = smul.u32 %s141, %s18
      %s143 = ssub.s32 0, %s18
      %s144 = smul.u32 %s17, %s143
      %s145 = sadd.s32 %s142, %s144
      %s146 = ssub.s32 1, %s29
      %s147 = smul.u32 %s146, %s25
      %s148 = ssub.s32 0, %s25
      %s149 = smul.u32 %s29, %s148
      %s150 = sadd.s32 %s147, %s149
      %s151 = ssub.s32 %s145, %s150
      %s152 = ssub.s32 %s17, %s29
      %s153 = sor.u32 %s151, %s152
      %p154 = scmp.eq.s32.totalorder %s153, 0
      %s156 = sadd.s32 %s155, 1
      %s157 = scalar_select %p154, %s155, %s156
      %p160 = pneg %p154
      %p161 = scmp.eq.s32.totalorder %s10, 1
      %p162 = por %p160, %p161
      %p163 = scmp.ne.s32.totalorder %s155, %s158
      %p164 = scmp.eq.s32.totalorder %s10, 0
      %p165 = por %p163, %p164
      %p166 = scmp.ne.s32.totalorder %s155, %s158
      %p167 = scmp.eq.s32.totalorder %s15, 1
      %p168 = por %p166, %p167
      %p169 = scmp.ne.s32.totalorder %s158, %s159
      %p170 = scmp.eq.s32.totalorder %s15, 0
      %p171 = por %p169, %p170
      %p172 = scmp.ne.s32.totalorder %s158, %s159
      %p173 = scmp.eq.s32.totalorder %s16, 1
      %p174 = por %p172, %p173
      %p176 = scmp.ne.s32.totalorder %s159, %s175
      %p177 = scmp.eq.s32.totalorder %s16, 0
      %p178 = por %p176, %p177
      %p179 = scmp.le.s32.totalorder 1, %s10
      %p180 = scmp.lt.s32.totalorder %s10, 3
      %p181 = pnand %p179, %p180
      %p182 = pneg %p181
      // Predicated region
      $region9: #{_bilstm_full.1} parent=5 // pred_check
        _
      $region10: #{_bilstm_full.1} parent=5 // pred_check_branch
        %184 = sbr.rel (%p181) target = $region12
      $region11: #{_bilstm_full.1} parent=5 // pred_region
        %s185 = ssub.s32 %s10, 1
        // Predicated region
        $region13: #{_bilstm_full.1} parent=11 // pred_check
          %p186 = pneg %p133
        $region14: #{_bilstm_full.1} parent=11 // pred_check_branch
          %188 = sbr.rel (%p186) target = $region16
        $region15: #{_bilstm_full.1} parent=11 // pred_region
          _
        $region16: #{_bilstm_full.1} parent=11 // pred_fallthru
          _
      $region12: #{_bilstm_full.1} parent=5 // pred_fallthru
        _
      %p189 = scmp.lt.s32.totalorder %s10, 2
      // Predicated region
      $region17: #{_bilstm_full.1} parent=5 // pred_check
        %p190 = pneg %p189
      $region18: #{_bilstm_full.1} parent=5 // pred_check_branch
        %192 = sbr.rel (%p190) target = $region20
      $region19: #{_bilstm_full.1} parent=5 // pred_region
        // Predicated region
        $region21: #{_bilstm_full.1} parent=19 // pred_check
          %p193 = pneg %p54
        $region22: #{_bilstm_full.1} parent=19 // pred_check_branch
          %195 = sbr.rel (%p193) target = $region24
        $region23: #{_bilstm_full.1} parent=19 // pred_region
          %s196 = ssub.s32 1, %s17
          %s197 = smul.u32 %s196, %s18
          %s198 = ssub.s32 0, %s18
          %s199 = smul.u32 %s17, %s198
          %s200 = sadd.s32 %s197, %s199
          %s201 = smul.u32 8, %s200
          %p202 = scmp.lt.s32.totalorder %s17, 1
          %s203 = scalar_select %p202, %s17, 1
          %p204 = scmp.lt.s32.totalorder %s201, 7
          %s205 = scalar_select %p204, %s201, 7
          %s206 = smul.addr %s205, 4
          %s207 = smul.addr %s203, 32
          %s208 = sadd.s32 %s206, %s207
          %s209 = smul.addr %s208, 8
          %s210 = scalar_lea.vmem %s0, %s209
          %s211 = ssub.s32 1, %s17
          %s212 = smul.u32 %s211, %s18
          %s213 = ssub.s32 0, %s18
          %s214 = smul.u32 %s17, %s213
          %s215 = sadd.s32 %s212, %s214
          %s216 = smul.u32 8, %s215
        $region24: #{_bilstm_full.1} parent=19 // pred_fallthru
          _
        // Predicated region
        $region25: #{_bilstm_full.1} parent=19 // pred_check
          %p217 = pneg %p80
        $region26: #{_bilstm_full.1} parent=19 // pred_check_branch
          %219 = sbr.rel (%p217) target = $region28
        $region27: #{_bilstm_full.1} parent=19 // pred_region
          %p220 = scmp.lt.s32.totalorder %s17, 1
          %s221 = scalar_select %p220, %s17, 1
          %s222 = smul.addr %s221, 64
          %s223 = smul.addr %s222, 8
          %s224 = scalar_lea.vmem %s1, %s223
        $region28: #{_bilstm_full.1} parent=19 // pred_fallthru
          _
        // Predicated region
        $region29: #{_bilstm_full.1} parent=19 // pred_check
          %p225 = pneg %p106
        $region30: #{_bilstm_full.1} parent=19 // pred_check_branch
          %227 = sbr.rel (%p225) target = $region32
        $region31: #{_bilstm_full.1} parent=19 // pred_region
          %p228 = scmp.lt.s32.totalorder %s17, 1
          %s229 = scalar_select %p228, %s17, 1
          %s230 = smul.addr %s229, 4
          %s231 = scalar_lea.vmem %s2, %s230
        $region32: #{_bilstm_full.1} parent=19 // pred_fallthru
          _
      $region20: #{_bilstm_full.1} parent=5 // pred_fallthru
        _
      %p232 = scmp.le.s32.totalorder 1, %s10
      %p233 = scmp.lt.s32.totalorder %s10, 3
      %p234 = pnand %p232, %p233
      %p235 = pneg %p234
      // Predicated region
      $region33: #{_bilstm_full.1} parent=5 // pred_check
        _
      $region34: #{_bilstm_full.1} parent=5 // pred_check_branch
        %237 = sbr.rel (%p234) target = $region36
      $region35: #{_bilstm_full.1} parent=5 // pred_region
        %s238 = ssub.s32 %s10, 1
        %s239 = ssub.s32 1, %s19
        %s240 = smul.u32 %s239, %s20
        %s241 = ssub.s32 0, %s20
        %s242 = smul.u32 %s19, %s241
        %s243 = sadd.s32 %s240, %s242
        %s244 = smul.u32 8, %s243
        %p245 = scmp.lt.s32.totalorder %s19, 1
        %s246 = scalar_select %p245, %s19, 1
        %p247 = scmp.lt.s32.totalorder %s244, 7
        %s248 = scalar_select %p247, %s244, 7
        %s249 = smul.addr %s248, 4
        %s250 = smul.addr %s246, 32
        %s251 = sadd.s32 %s249, %s250
        %s252 = smul.addr %s251, 8
        %s253 = scalar_lea.vmem %s0, %s252
        %p254 = pneg %p60
        %p255 = pneg %p57
        %p256 = scmp.lt.s32.totalorder %s19, 1
        %s257 = scalar_select %p256, %s19, 1
        %s258 = smul.addr %s257, 64
        %s259 = smul.addr %s258, 8
        %s260 = scalar_lea.vmem %s1, %s259
        %p261 = pneg %p86
        %p262 = pneg %p83
        %p263 = scmp.lt.s32.totalorder %s19, 1
        %s264 = scalar_select %p263, %s19, 1
        %s265 = smul.addr %s264, 4
        %s266 = scalar_lea.vmem %s2, %s265
        %p267 = pneg %p112
        %p268 = pneg %p109
        %p269 = pneg %p133
        %p270 = pneg %p130
        %p271 = pneg %p171
        %p272 = pneg %p168
        %s273 = sand.u32 %s158, 1
        %s274 = sand.u32 %s158, 1
        %s275 = smul.addr %s274, 64
        %s276 = scalar_lea.vmem [#allocation4], %s275
        %s277 = ssub.s32 1, %s19
        %s278 = smul.u32 %s277, %s20
        %s279 = ssub.s32 0, %s20
        %s280 = smul.u32 %s19, %s279
        %s281 = sadd.s32 %s278, %s280
        %s282 = smul.u32 8, %s281
        %p283 = scmp.lt.s32.totalorder %s19, 1
        %s284 = scalar_select %p283, %s19, 1
        %p285 = scmp.lt.s32.totalorder %s282, 7
        %s286 = scalar_select %p285, %s282, 7
        %s287 = smul.addr %s286, 4
        %s288 = smul.addr %s284, 32
        %s289 = sadd.s32 %s287, %s288
        %s290 = smul.addr %s289, 8
        %s291 = scalar_lea.vmem %s0, %s290
        %s292 = ssub.s32 1, %s19
        %s293 = smul.u32 %s292, %s20
        %s294 = ssub.s32 0, %s20
        %s295 = smul.u32 %s19, %s294
        %s296 = sadd.s32 %s293, %s295
        %s297 = smul.u32 8, %s296
        %p298 = scmp.lt.s32.totalorder %s19, 1
        %s299 = scalar_select %p298, %s19, 1
        %s300 = smul.addr %s299, 64
        %s301 = smul.addr %s300, 8
        %s302 = scalar_lea.vmem %s1, %s301
        %p303 = scmp.lt.s32.totalorder %s19, 1
        %s304 = scalar_select %p303, %s19, 1
        %s305 = smul.addr %s304, 4
        %s306 = scalar_lea.vmem %s2, %s305
        %s307 = ssub.s32 1, %s19
        %s308 = smul.u32 %s307, %s20
        %s309 = ssub.s32 0, %s20
        %s310 = smul.u32 %s19, %s309
        %s311 = sadd.s32 %s308, %s310
        %s312 = smul.u32 8, %s311
        %p313 = scmp.eq.s32.totalorder %s20, 0
        // Predicated region
        $region37: #{_bilstm_full.1} parent=35 // pred_check
          %p314 = pneg %p313
        $region38: #{_bilstm_full.1} parent=35 // pred_check_branch
          %316 = sbr.rel (%p314) target = $region40
        $region39: #{_bilstm_full.1} parent=35 // pred_region
          %s317 = smul.u32 %s19, 8
          %s318 = scalar_lea.vmem [#allocation2], %s317
          %319 = vst [vmem:[%s318] sm:$0xff] 0.0
          %s320 = scalar_lea.vmem [#allocation3], %s317
          %321 = vst [vmem:[%s320] sm:$0xff] 0.0
        $region40: #{_bilstm_full.1} parent=35 // pred_fallthru
          _
        %s322 = ssub.s32 1, %s19
        %s323 = smul.u32 %s322, %s20
        %s324 = ssub.s32 0, %s20
        %s325 = smul.u32 %s19, %s324
        %s326 = sadd.s32 %s323, %s325
        %s327 = smul.u32 %s326, 8
        %v328 = vld [vmem:[%s3] sm:$0xff]
        %v329 = vld [vmem:[%s306] sm:$0xf]
        %v330 = vld [vmem:[%s302] sm:$0xff]
        %v331 = vld [vmem:[%s302 + $0x8] sm:$0xff]
        %v332 = vld [vmem:[%s302 + $0x10] sm:$0xff]
        %v333 = vld [vmem:[%s302 + $0x18] sm:$0xff]
        %v334 = vld [vmem:[%s302 + $0x20] sm:$0xff]
        %v335 = vld [vmem:[%s302 + $0x28] sm:$0xff]
        %v336 = vld [vmem:[%s302 + $0x30] sm:$0xff]
        %v337 = vld [vmem:[%s302 + $0x38] sm:$0xff]
        %v338 = vld [vmem:[%s302 + $0x40] sm:$0xff]
        %v339 = vld [vmem:[%s302 + $0x48] sm:$0xff]
        %v340 = vld [vmem:[%s302 + $0x50] sm:$0xff]
        %v341 = vld [vmem:[%s302 + $0x58] sm:$0xff]
        %v342 = vld [vmem:[%s302 + $0x60] sm:$0xff]
        %v343 = vld [vmem:[%s302 + $0x68] sm:$0xff]
        %v344 = vld [vmem:[%s302 + $0x70] sm:$0xff]
        %v345 = vld [vmem:[%s302 + $0x78] sm:$0xff]
        %v346 = vld [vmem:[%s302 + $0x80] sm:$0xff]
        %v347 = vld [vmem:[%s302 + $0x88] sm:$0xff]
        %v348 = vld [vmem:[%s302 + $0x90] sm:$0xff]
        %v349 = vld [vmem:[%s302 + $0x98] sm:$0xff]
        %v350 = vld [vmem:[%s302 + $0xa0] sm:$0xff]
        %v351 = vld [vmem:[%s302 + $0xa8] sm:$0xff]
        %v352 = vld [vmem:[%s302 + $0xb0] sm:$0xff]
        %v353 = vld [vmem:[%s302 + $0xb8] sm:$0xff]
        %v354 = vld [vmem:[%s302 + $0xc0] sm:$0xff]
        %v355 = vld [vmem:[%s302 + $0xc8] sm:$0xff]
        %v356 = vld [vmem:[%s302 + $0xd0] sm:$0xff]
        %v357 = vld [vmem:[%s302 + $0xd8] sm:$0xff]
        %v358 = vld [vmem:[%s302 + $0xe0] sm:$0xff]
        %v359 = vld [vmem:[%s302 + $0xe8] sm:$0xff]
        %v360 = vld [vmem:[%s302 + $0xf0] sm:$0xff]
        %v361 = vld [vmem:[%s302 + $0xf8] sm:$0xff]
        %v362 = vld [vmem:[%s302 + $0x100] sm:$0xff]
        %v363 = vld [vmem:[%s302 + $0x108] sm:$0xff]
        %v364 = vld [vmem:[%s302 + $0x110] sm:$0xff]
        %v365 = vld [vmem:[%s302 + $0x118] sm:$0xff]
        %v366 = vld [vmem:[%s302 + $0x120] sm:$0xff]
        %v367 = vld [vmem:[%s302 + $0x128] sm:$0xff]
        %v368 = vld [vmem:[%s302 + $0x130] sm:$0xff]
        %v369 = vld [vmem:[%s302 + $0x138] sm:$0xff]
        %v370 = vld [vmem:[%s302 + $0x140] sm:$0xff]
        %v371 = vld [vmem:[%s302 + $0x148] sm:$0xff]
        %v372 = vld [vmem:[%s302 + $0x150] sm:$0xff]
        %v373 = vld [vmem:[%s302 + $0x158] sm:$0xff]
        %v374 = vld [vmem:[%s302 + $0x160] sm:$0xff]
        %v375 = vld [vmem:[%s302 + $0x168] sm:$0xff]
        %v376 = vld [vmem:[%s302 + $0x170] sm:$0xff]
        %v377 = vld [vmem:[%s302 + $0x178] sm:$0xff]
        %v378 = vld [vmem:[%s302 + $0x180] sm:$0xff]
        %v379 = vld [vmem:[%s302 + $0x188] sm:$0xff]
        %v380 = vld [vmem:[%s302 + $0x190] sm:$0xff]
        %v381 = vld [vmem:[%s302 + $0x198] sm:$0xff]
        %v382 = vld [vmem:[%s302 + $0x1a0] sm:$0xff]
        %v383 = vld [vmem:[%s302 + $0x1a8] sm:$0xff]
        %v384 = vld [vmem:[%s302 + $0x1b0] sm:$0xff]
        %v385 = vld [vmem:[%s302 + $0x1b8] sm:$0xff]
        %v386 = vld [vmem:[%s302 + $0x1c0] sm:$0xff]
        %v387 = vld [vmem:[%s302 + $0x1c8] sm:$0xff]
        %v388 = vld [vmem:[%s302 + $0x1d0] sm:$0xff]
        %v389 = vld [vmem:[%s302 + $0x1d8] sm:$0xff]
        %v390 = vld [vmem:[%s302 + $0x1e0] sm:$0xff]
        %v391 = vld [vmem:[%s302 + $0x1e8] sm:$0xff]
        %v392 = vld [vmem:[%s302 + $0x1f0] sm:$0xff]
        %v393 = vld [vmem:[%s302 + $0x1f8] sm:$0xff]
        %s394 = smul.u32 %s19, 8
        %s395 = scalar_lea.vmem [#allocation2], %s394
        %v396 = vld [vmem:[%s395] sm:$0xff]
        %s397 = scalar_lea.vmem [#allocation3], %s394
        %v398 = vld [vmem:[%s397] sm:$0xff]
        %s399 = smul.u32 %s19, 7
        %s400 = sadd.s32 %s327, %s399
        %s401 = smul.u32 %s399, 4
        %s402 = smul.addr %s401, 8
        %s403 = scalar_lea.vmem %s291, %s402
        %v404 = vld [vmem:[%s403] sm:$0xff]
        %v405 = vld [vmem:[%s403 + $0x8] sm:$0xff]
        %v406 = vld [vmem:[%s403 + $0x10] sm:$0xff]
        %v407 = vld [vmem:[%s403 + $0x18] sm:$0xff]
        %v409 = vperm.slane %v329, 0
        %v410 = vperm.slane %v329, 1
        %v411 = vperm.slane %v329, 2
        %v412 = vperm.slane %v329, 3
        %v417 = vadd.f32 %v404, %v409
        %v418 = vadd.f32 %v405, %v410
        %v419 = vadd.f32 %v406, %v411
        %v420 = vadd.f32 %v407, %v412
        %421 = vmatpush.msra.mxu0 %v390
        %422 = vmatpush.msra.mxu0 %v386
        %423 = vmatpush.msra.mxu0 %v382
        %424 = vmatpush.msra.mxu0 %v378
        %425 = vmatpush.msra.mxu0 %v374
        %426 = vmatpush.msra.mxu0 %v370
        %427 = vmatpush.msra.mxu0 %v366
        %428 = vmatpush.msra.mxu0 %v362
        %429 = vmatpush.msra.mxu0 %v358
        %430 = vmatpush.msra.mxu0 %v354
        %431 = vmatpush.msra.mxu0 %v350
        %432 = vmatpush.msra.mxu0 %v346
        %433 = vmatpush.msra.mxu0 %v342
        %434 = vmatpush.msra.mxu0 %v338
        %435 = vmatpush.msra.mxu0 %v334
        %436 = vmatpush.msra.mxu0 %v330
        %437 = vmatmul.f32.gmra.mxu0 %v396
        %v438 = vpop.f32.mrf.mxu0
        %v439 = vadd.f32 0.0, %v438
        %440 = vdwg.mxu0
        %441 = vmatpush.msra.mxu0 %v391
        %442 = vmatpush.msra.mxu0 %v387
        %443 = vmatpush.msra.mxu0 %v383
        %444 = vmatpush.msra.mxu0 %v379
        %445 = vmatpush.msra.mxu0 %v375
        %446 = vmatpush.msra.mxu0 %v371
        %447 = vmatpush.msra.mxu0 %v367
        %448 = vmatpush.msra.mxu0 %v363
        %449 = vmatpush.msra.mxu0 %v359
        %450 = vmatpush.msra.mxu0 %v355
        %451 = vmatpush.msra.mxu0 %v351
        %452 = vmatpush.msra.mxu0 %v347
        %453 = vmatpush.msra.mxu0 %v343
        %454 = vmatpush.msra.mxu0 %v339
        %455 = vmatpush.msra.mxu0 %v335
        %456 = vmatpush.msra.mxu0 %v331
        %457 = vmatmul.f32.gmra.mxu0 %v396
        %v458 = vpop.f32.mrf.mxu0
        %v459 = vadd.f32 0.0, %v458
        %460 = vdwg.mxu0
        %461 = vmatpush.msra.mxu0 %v392
        %462 = vmatpush.msra.mxu0 %v388
        %463 = vmatpush.msra.mxu0 %v384
        %464 = vmatpush.msra.mxu0 %v380
        %465 = vmatpush.msra.mxu0 %v376
        %466 = vmatpush.msra.mxu0 %v372
        %467 = vmatpush.msra.mxu0 %v368
        %468 = vmatpush.msra.mxu0 %v364
        %469 = vmatpush.msra.mxu0 %v360
        %470 = vmatpush.msra.mxu0 %v356
        %471 = vmatpush.msra.mxu0 %v352
        %472 = vmatpush.msra.mxu0 %v348
        %473 = vmatpush.msra.mxu0 %v344
        %474 = vmatpush.msra.mxu0 %v340
        %475 = vmatpush.msra.mxu0 %v336
        %476 = vmatpush.msra.mxu0 %v332
        %477 = vmatmul.f32.gmra.mxu0 %v396
        %v478 = vpop.f32.mrf.mxu0
        %v479 = vadd.f32 0.0, %v478
        %480 = vdwg.mxu0
        %481 = vmatpush.msra.mxu0 %v393
        %482 = vmatpush.msra.mxu0 %v389
        %483 = vmatpush.msra.mxu0 %v385
        %484 = vmatpush.msra.mxu0 %v381
        %485 = vmatpush.msra.mxu0 %v377
        %486 = vmatpush.msra.mxu0 %v373
        %487 = vmatpush.msra.mxu0 %v369
        %488 = vmatpush.msra.mxu0 %v365
        %489 = vmatpush.msra.mxu0 %v361
        %490 = vmatpush.msra.mxu0 %v357
        %491 = vmatpush.msra.mxu0 %v353
        %492 = vmatpush.msra.mxu0 %v349
        %493 = vmatpush.msra.mxu0 %v345
        %494 = vmatpush.msra.mxu0 %v341
        %495 = vmatpush.msra.mxu0 %v337
        %496 = vmatpush.msra.mxu0 %v333
        %497 = vmatmul.f32.gmra.mxu0 %v396
        %v498 = vpop.f32.mrf.mxu0
        %v499 = vadd.f32 0.0, %v498
        %500 = vdwg.mxu0
        %v501 = vadd.f32 %v417, %v439
        %v502 = vadd.f32 %v418, %v459
        %v503 = vadd.f32 %v419, %v479
        %v504 = vadd.f32 %v420, %v499
        %v505 = vxor.u32 %v501, 2147483648
        %v506 = vmul.f32 %v505, 1.442695
        %v507 = vpow.pop %v506
        %v508 = vadd.f32 %v507, 1.0
        %v509 = vrcp.pop %v508
        %v510 = vmul.f32 %v508, %v509
        %v511 = vsub.f32 1.0, %v510
        %v512 = vmul.f32 %v509, %v511
        %v513 = vadd.f32 %v509, %v512
        %vm514 = vweird.f32 %v508
        %vm515 = vweird.f32 %v509
        %vm516 = vmor %vm514, %vm515
        %v517 = vsel %vm516, %v509, %v513
        %v518 = vand.u32 2147483647, %v508
        %vm519 = vcmp.eq.f32.partialorder %v518, 8.507059e+37
        %v520 = vand.u32 %v508, 2147483648
        %v521 = vor.u32 1.1754944e-38, %v520
        %v522 = vsel %vm519, %v521, %v517
        %v523 = vmul.f32 1.0, %v522
        %v524 = vxor.u32 %v502, 2147483648
        %v525 = vmul.f32 %v524, 1.442695
        %v526 = vpow.pop %v525
        %v527 = vadd.f32 %v526, 1.0
        %v528 = vrcp.pop %v527
        %v529 = vmul.f32 %v527, %v528
        %v530 = vsub.f32 1.0, %v529
        %v531 = vmul.f32 %v528, %v530
        %v532 = vadd.f32 %v528, %v531
        %vm533 = vweird.f32 %v527
        %vm534 = vweird.f32 %v528
        %vm535 = vmor %vm533, %vm534
        %v536 = vsel %vm535, %v528, %v532
        %v537 = vand.u32 2147483647, %v527
        %vm538 = vcmp.eq.f32.partialorder %v537, 8.507059e+37
        %v539 = vand.u32 %v527, 2147483648
        %v540 = vor.u32 1.1754944e-38, %v539
        %v541 = vsel %vm538, %v540, %v536
        %v542 = vmul.f32 1.0, %v541
        %v543 = vtanh.pop %v503
        %v544 = vxor.u32 %v504, 2147483648
        %v545 = vmul.f32 %v544, 1.442695
        %v546 = vpow.pop %v545
        %v547 = vadd.f32 %v546, 1.0
        %v548 = vrcp.pop %v547
        %v549 = vmul.f32 %v547, %v548
        %v550 = vsub.f32 1.0, %v549
        %v551 = vmul.f32 %v548, %v550
        %v552 = vadd.f32 %v548, %v551
        %vm553 = vweird.f32 %v547
        %vm554 = vweird.f32 %v548
        %vm555 = vmor %vm553, %vm554
        %v556 = vsel %vm555, %v548, %v552
        %v557 = vand.u32 2147483647, %v547
        %vm558 = vcmp.eq.f32.partialorder %v557, 8.507059e+37
        %v559 = vand.u32 %v547, 2147483648
        %v560 = vor.u32 1.1754944e-38, %v559
        %v561 = vsel %vm558, %v560, %v556
        %v562 = vmul.f32 1.0, %v561
        %v563 = vmul.f32 %v542, %v398
        %v564 = vmul.f32 %v523, %v543
        %v565 = vadd.f32 %v563, %v564
        %v566 = vtanh.pop %v565
        %v567 = vmul.f32 %v562, %v566
        %v568 = vstv %s400
        %vm569 = vcmp.lt.s32.totalorder %v568, %v328
        %v570 = vsel %vm569, 1, 0
        %571 = vset.pattern.permute.xlu0 0
        %572 = vperm.xlu0 %571, %v570
        %v573 = vpop.permute.xlu0 %572
        %vm574 = vcmp.eq.s32.totalorder %v573, 1
        %v575 = vsel %vm574, %v567, %v396
        %v576 = vsel %vm574, %v565, %v398
        %v577 = vsel %vm574, %v567, 0.0
        %s578 = smul.u32 %s399, 8
        %s579 = scalar_lea.vmem %s276, %s578 [#allocation4]
        %580 = vst [vmem:[%s579] sm:$0xff] %v577
        %s581 = smul.u32 %s19, 6
        %s582 = sadd.s32 %s322, %s581
        %s583 = sadd.s32 %s327, %s582
        %s584 = smul.u32 %s582, 4
        %s585 = smul.addr %s584, 8
        %s586 = scalar_lea.vmem %s291, %s585
        %v587 = vld [vmem:[%s586] sm:$0xff]
        %v588 = vld [vmem:[%s586 + $0x8] sm:$0xff]
        %v589 = vld [vmem:[%s586 + $0x10] sm:$0xff]
        %v590 = vld [vmem:[%s586 + $0x18] sm:$0xff]
        %v591 = vadd.f32 %v587, %v409
        %v592 = vadd.f32 %v588, %v410
        %v593 = vadd.f32 %v589, %v411
        %v594 = vadd.f32 %v590, %v412
        %595 = vmatpush.msra.mxu0 %v390
        %596 = vmatpush.msra.mxu0 %v386
        %597 = vmatpush.msra.mxu0 %v382
        %598 = vmatpush.msra.mxu0 %v378
        %599 = vmatpush.msra.mxu0 %v374
        %600 = vmatpush.msra.mxu0 %v370
        %601 = vmatpush.msra.mxu0 %v366
        %602 = vmatpush.msra.mxu0 %v362
        %603 = vmatpush.msra.mxu0 %v358
        %604 = vmatpush.msra.mxu0 %v354
        %605 = vmatpush.msra.mxu0 %v350
        %606 = vmatpush.msra.mxu0 %v346
        %607 = vmatpush.msra.mxu0 %v342
        %608 = vmatpush.msra.mxu0 %v338
        %609 = vmatpush.msra.mxu0 %v334
        %610 = vmatpush.msra.mxu0 %v330
        %611 = vmatmul.f32.gmra.mxu0 %v575
        %v612 = vpop.f32.mrf.mxu0
        %v613 = vadd.f32 0.0, %v612
        %614 = vdwg.mxu0
        %615 = vmatpush.msra.mxu0 %v391
        %616 = vmatpush.msra.mxu0 %v387
        %617 = vmatpush.msra.mxu0 %v383
        %618 = vmatpush.msra.mxu0 %v379
        %619 = vmatpush.msra.mxu0 %v375
        %620 = vmatpush.msra.mxu0 %v371
        %621 = vmatpush.msra.mxu0 %v367
        %622 = vmatpush.msra.mxu0 %v363
        %623 = vmatpush.msra.mxu0 %v359
        %624 = vmatpush.msra.mxu0 %v355
        %625 = vmatpush.msra.mxu0 %v351
        %626 = vmatpush.msra.mxu0 %v347
        %627 = vmatpush.msra.mxu0 %v343
        %628 = vmatpush.msra.mxu0 %v339
        %629 = vmatpush.msra.mxu0 %v335
        %630 = vmatpush.msra.mxu0 %v331
        %631 = vmatmul.f32.gmra.mxu0 %v575
        %v632 = vpop.f32.mrf.mxu0
        %v633 = vadd.f32 0.0, %v632
        %634 = vdwg.mxu0
        %635 = vmatpush.msra.mxu0 %v392
        %636 = vmatpush.msra.mxu0 %v388
        %637 = vmatpush.msra.mxu0 %v384
        %638 = vmatpush.msra.mxu0 %v380
        %639 = vmatpush.msra.mxu0 %v376
        %640 = vmatpush.msra.mxu0 %v372
        %641 = vmatpush.msra.mxu0 %v368
        %642 = vmatpush.msra.mxu0 %v364
        %643 = vmatpush.msra.mxu0 %v360
        %644 = vmatpush.msra.mxu0 %v356
        %645 = vmatpush.msra.mxu0 %v352
        %646 = vmatpush.msra.mxu0 %v348
        %647 = vmatpush.msra.mxu0 %v344
        %648 = vmatpush.msra.mxu0 %v340
        %649 = vmatpush.msra.mxu0 %v336
        %650 = vmatpush.msra.mxu0 %v332
        %651 = vmatmul.f32.gmra.mxu0 %v575
        %v652 = vpop.f32.mrf.mxu0
        %v653 = vadd.f32 0.0, %v652
        %654 = vdwg.mxu0
        %655 = vmatpush.msra.mxu0 %v393
        %656 = vmatpush.msra.mxu0 %v389
        %657 = vmatpush.msra.mxu0 %v385
        %658 = vmatpush.msra.mxu0 %v381
        %659 = vmatpush.msra.mxu0 %v377
        %660 = vmatpush.msra.mxu0 %v373
        %661 = vmatpush.msra.mxu0 %v369
        %662 = vmatpush.msra.mxu0 %v365
        %663 = vmatpush.msra.mxu0 %v361
        %664 = vmatpush.msra.mxu0 %v357
        %665 = vmatpush.msra.mxu0 %v353
        %666 = vmatpush.msra.mxu0 %v349
        %667 = vmatpush.msra.mxu0 %v345
        %668 = vmatpush.msra.mxu0 %v341
        %669 = vmatpush.msra.mxu0 %v337
        %670 = vmatpush.msra.mxu0 %v333
        %671 = vmatmul.f32.gmra.mxu0 %v575
        %v672 = vpop.f32.mrf.mxu0
        %v673 = vadd.f32 0.0, %v672
        %674 = vdwg.mxu0
        %v675 = vadd.f32 %v591, %v613
        %v676 = vadd.f32 %v592, %v633
        %v677 = vadd.f32 %v593, %v653
        %v678 = vadd.f32 %v594, %v673
        %v679 = vxor.u32 %v675, 2147483648
        %v680 = vmul.f32 %v679, 1.442695
        %v681 = vpow.pop %v680
        %v682 = vadd.f32 %v681, 1.0
        %v683 = vrcp.pop %v682
        %v684 = vmul.f32 %v682, %v683
        %v685 = vsub.f32 1.0, %v684
        %v686 = vmul.f32 %v683, %v685
        %v687 = vadd.f32 %v683, %v686
        %vm688 = vweird.f32 %v682
        %vm689 = vweird.f32 %v683
        %vm690 = vmor %vm688, %vm689
        %v691 = vsel %vm690, %v683, %v687
        %v692 = vand.u32 2147483647, %v682
        %vm693 = vcmp.eq.f32.partialorder %v692, 8.507059e+37
        %v694 = vand.u32 %v682, 2147483648
        %v695 = vor.u32 1.1754944e-38, %v694
        %v696 = vsel %vm693, %v695, %v691
        %v697 = vmul.f32 1.0, %v696
        %v698 = vxor.u32 %v676, 2147483648
        %v699 = vmul.f32 %v698, 1.442695
        %v700 = vpow.pop %v699
        %v701 = vadd.f32 %v700, 1.0
        %v702 = vrcp.pop %v701
        %v703 = vmul.f32 %v701, %v702
        %v704 = vsub.f32 1.0, %v703
        %v705 = vmul.f32 %v702, %v704
        %v706 = vadd.f32 %v702, %v705
        %vm707 = vweird.f32 %v701
        %vm708 = vweird.f32 %v702
        %vm709 = vmor %vm707, %vm708
        %v710 = vsel %vm709, %v702, %v706
        %v711 = vand.u32 2147483647, %v701
        %vm712 = vcmp.eq.f32.partialorder %v711, 8.507059e+37
        %v713 = vand.u32 %v701, 2147483648
        %v714 = vor.u32 1.1754944e-38, %v713
        %v715 = vsel %vm712, %v714, %v710
        %v716 = vmul.f32 1.0, %v715
        %v717 = vtanh.pop %v677
        %v718 = vxor.u32 %v678, 2147483648
        %v719 = vmul.f32 %v718, 1.442695
        %v720 = vpow.pop %v719
        %v721 = vadd.f32 %v720, 1.0
        %v722 = vrcp.pop %v721
        %v723 = vmul.f32 %v721, %v722
        %v724 = vsub.f32 1.0, %v723
        %v725 = vmul.f32 %v722, %v724
        %v726 = vadd.f32 %v722, %v725
        %vm727 = vweird.f32 %v721
        %vm728 = vweird.f32 %v722
        %vm729 = vmor %vm727, %vm728
        %v730 = vsel %vm729, %v722, %v726
        %v731 = vand.u32 2147483647, %v721
        %vm732 = vcmp.eq.f32.partialorder %v731, 8.507059e+37
        %v733 = vand.u32 %v721, 2147483648
        %v734 = vor.u32 1.1754944e-38, %v733
        %v735 = vsel %vm732, %v734, %v730
        %v736 = vmul.f32 1.0, %v735
        %v737 = vmul.f32 %v716, %v576
        %v738 = vmul.f32 %v697, %v717
        %v739 = vadd.f32 %v737, %v738
        %v740 = vtanh.pop %v739
        %v741 = vmul.f32 %v736, %v740
        %v742 = vstv %s583
        %vm743 = vcmp.lt.s32.totalorder %v742, %v328
        %v744 = vsel %vm743, 1, 0
        %745 = vset.pattern.permute.xlu0 0
        %746 = vperm.xlu0 %745, %v744
        %v747 = vpop.permute.xlu0 %746
        %vm748 = vcmp.eq.s32.totalorder %v747, 1
        %v749 = vsel %vm748, %v741, %v575
        %v750 = vsel %vm748, %v739, %v576
        %v751 = vsel %vm748, %v741, 0.0
        %s752 = smul.u32 %s582, 8
        %s753 = scalar_lea.vmem %s276, %s752 [#allocation4]
        %754 = vst [vmem:[%s753] sm:$0xff] %v751
        %s755 = smul.u32 %s322, 2
        %s756 = smul.u32 %s19, 5
        %s757 = sadd.s32 %s755, %s756
        %s758 = sadd.s32 %s327, %s757
        %s759 = smul.u32 %s757, 4
        %s760 = smul.addr %s759, 8
        %s761 = scalar_lea.vmem %s291, %s760
        %v762 = vld [vmem:[%s761] sm:$0xff]
        %v763 = vld [vmem:[%s761 + $0x8] sm:$0xff]
        %v764 = vld [vmem:[%s761 + $0x10] sm:$0xff]
        %v765 = vld [vmem:[%s761 + $0x18] sm:$0xff]
        %v766 = vadd.f32 %v762, %v409
        %v767 = vadd.f32 %v763, %v410
        %v768 = vadd.f32 %v764, %v411
        %v769 = vadd.f32 %v765, %v412
        %770 = vmatpush.msra.mxu0 %v390
        %771 = vmatpush.msra.mxu0 %v386
        %772 = vmatpush.msra.mxu0 %v382
        %773 = vmatpush.msra.mxu0 %v378
        %774 = vmatpush.msra.mxu0 %v374
        %775 = vmatpush.msra.mxu0 %v370
        %776 = vmatpush.msra.mxu0 %v366
        %777 = vmatpush.msra.mxu0 %v362
        %778 = vmatpush.msra.mxu0 %v358
        %779 = vmatpush.msra.mxu0 %v354
        %780 = vmatpush.msra.mxu0 %v350
        %781 = vmatpush.msra.mxu0 %v346
        %782 = vmatpush.msra.mxu0 %v342
        %783 = vmatpush.msra.mxu0 %v338
        %784 = vmatpush.msra.mxu0 %v334
        %785 = vmatpush.msra.mxu0 %v330
        %786 = vmatmul.f32.gmra.mxu0 %v749
        %v787 = vpop.f32.mrf.mxu0
        %v788 = vadd.f32 0.0, %v787
        %789 = vdwg.mxu0
        %790 = vmatpush.msra.mxu0 %v391
        %791 = vmatpush.msra.mxu0 %v387
        %792 = vmatpush.msra.mxu0 %v383
        %793 = vmatpush.msra.mxu0 %v379
        %794 = vmatpush.msra.mxu0 %v375
        %795 = vmatpush.msra.mxu0 %v371
        %796 = vmatpush.msra.mxu0 %v367
        %797 = vmatpush.msra.mxu0 %v363
        %798 = vmatpush.msra.mxu0 %v359
        %799 = vmatpush.msra.mxu0 %v355
        %800 = vmatpush.msra.mxu0 %v351
        %801 = vmatpush.msra.mxu0 %v347
        %802 = vmatpush.msra.mxu0 %v343
        %803 = vmatpush.msra.mxu0 %v339
        %804 = vmatpush.msra.mxu0 %v335
        %805 = vmatpush.msra.mxu0 %v331
        %806 = vmatmul.f32.gmra.mxu0 %v749
        %v807 = vpop.f32.mrf.mxu0
        %v808 = vadd.f32 0.0, %v807
        %809 = vdwg.mxu0
        %810 = vmatpush.msra.mxu0 %v392
        %811 = vmatpush.msra.mxu0 %v388
        %812 = vmatpush.msra.mxu0 %v384
        %813 = vmatpush.msra.mxu0 %v380
        %814 = vmatpush.msra.mxu0 %v376
        %815 = vmatpush.msra.mxu0 %v372
        %816 = vmatpush.msra.mxu0 %v368
        %817 = vmatpush.msra.mxu0 %v364
        %818 = vmatpush.msra.mxu0 %v360
        %819 = vmatpush.msra.mxu0 %v356
        %820 = vmatpush.msra.mxu0 %v352
        %821 = vmatpush.msra.mxu0 %v348
        %822 = vmatpush.msra.mxu0 %v344
        %823 = vmatpush.msra.mxu0 %v340
        %824 = vmatpush.msra.mxu0 %v336
        %825 = vmatpush.msra.mxu0 %v332
        %826 = vmatmul.f32.gmra.mxu0 %v749
        %v827 = vpop.f32.mrf.mxu0
        %v828 = vadd.f32 0.0, %v827
        %829 = vdwg.mxu0
        %830 = vmatpush.msra.mxu0 %v393
        %831 = vmatpush.msra.mxu0 %v389
        %832 = vmatpush.msra.mxu0 %v385
        %833 = vmatpush.msra.mxu0 %v381
        %834 = vmatpush.msra.mxu0 %v377
        %835 = vmatpush.msra.mxu0 %v373
        %836 = vmatpush.msra.mxu0 %v369
        %837 = vmatpush.msra.mxu0 %v365
        %838 = vmatpush.msra.mxu0 %v361
        %839 = vmatpush.msra.mxu0 %v357
        %840 = vmatpush.msra.mxu0 %v353
        %841 = vmatpush.msra.mxu0 %v349
        %842 = vmatpush.msra.mxu0 %v345
        %843 = vmatpush.msra.mxu0 %v341
        %844 = vmatpush.msra.mxu0 %v337
        %845 = vmatpush.msra.mxu0 %v333
        %846 = vmatmul.f32.gmra.mxu0 %v749
        %v847 = vpop.f32.mrf.mxu0
        %v848 = vadd.f32 0.0, %v847
        %849 = vdwg.mxu0
        %v850 = vadd.f32 %v766, %v788
        %v851 = vadd.f32 %v767, %v808
        %v852 = vadd.f32 %v768, %v828
        %v853 = vadd.f32 %v769, %v848
        %v854 = vxor.u32 %v850, 2147483648
        %v855 = vmul.f32 %v854, 1.442695
        %v856 = vpow.pop %v855
        %v857 = vadd.f32 %v856, 1.0
        %v858 = vrcp.pop %v857
        %v859 = vmul.f32 %v857, %v858
        %v860 = vsub.f32 1.0, %v859
        %v861 = vmul.f32 %v858, %v860
        %v862 = vadd.f32 %v858, %v861
        %vm863 = vweird.f32 %v857
        %vm864 = vweird.f32 %v858
        %vm865 = vmor %vm863, %vm864
        %v866 = vsel %vm865, %v858, %v862
        %v867 = vand.u32 2147483647, %v857
        %vm868 = vcmp.eq.f32.partialorder %v867, 8.507059e+37
        %v869 = vand.u32 %v857, 2147483648
        %v870 = vor.u32 1.1754944e-38, %v869
        %v871 = vsel %vm868, %v870, %v866
        %v872 = vmul.f32 1.0, %v871
        %v873 = vxor.u32 %v851, 2147483648
        %v874 = vmul.f32 %v873, 1.442695
        %v875 = vpow.pop %v874
        %v876 = vadd.f32 %v875, 1.0
        %v877 = vrcp.pop %v876
        %v878 = vmul.f32 %v876, %v877
        %v879 = vsub.f32 1.0, %v878
        %v880 = vmul.f32 %v877, %v879
        %v881 = vadd.f32 %v877, %v880
        %vm882 = vweird.f32 %v876
        %vm883 = vweird.f32 %v877
        %vm884 = vmor %vm882, %vm883
        %v885 = vsel %vm884, %v877, %v881
        %v886 = vand.u32 2147483647, %v876
        %vm887 = vcmp.eq.f32.partialorder %v886, 8.507059e+37
        %v888 = vand.u32 %v876, 2147483648
        %v889 = vor.u32 1.1754944e-38, %v888
        %v890 = vsel %vm887, %v889, %v885
        %v891 = vmul.f32 1.0, %v890
        %v892 = vtanh.pop %v852
        %v893 = vxor.u32 %v853, 2147483648
        %v894 = vmul.f32 %v893, 1.442695
        %v895 = vpow.pop %v894
        %v896 = vadd.f32 %v895, 1.0
        %v897 = vrcp.pop %v896
        %v898 = vmul.f32 %v896, %v897
        %v899 = vsub.f32 1.0, %v898
        %v900 = vmul.f32 %v897, %v899
        %v901 = vadd.f32 %v897, %v900
        %vm902 = vweird.f32 %v896
        %vm903 = vweird.f32 %v897
        %vm904 = vmor %vm902, %vm903
        %v905 = vsel %vm904, %v897, %v901
        %v906 = vand.u32 2147483647, %v896
        %vm907 = vcmp.eq.f32.partialorder %v906, 8.507059e+37
        %v908 = vand.u32 %v896, 2147483648
        %v909 = vor.u32 1.1754944e-38, %v908
        %v910 = vsel %vm907, %v909, %v905
        %v911 = vmul.f32 1.0, %v910
        %v912 = vmul.f32 %v891, %v750
        %v913 = vmul.f32 %v872, %v892
        %v914 = vadd.f32 %v912, %v913
        %v915 = vtanh.pop %v914
        %v916 = vmul.f32 %v911, %v915
        %v917 = vstv %s758
        %vm918 = vcmp.lt.s32.totalorder %v917, %v328
        %v919 = vsel %vm918, 1, 0
        %920 = vset.pattern.permute.xlu0 0
        %921 = vperm.xlu0 %920, %v919
        %v922 = vpop.permute.xlu0 %921
        %vm923 = vcmp.eq.s32.totalorder %v922, 1
        %v924 = vsel %vm923, %v916, %v749
        %v925 = vsel %vm923, %v914, %v750
        %v926 = vsel %vm923, %v916, 0.0
        %s927 = smul.u32 %s757, 8
        %s928 = scalar_lea.vmem %s276, %s927 [#allocation4]
        %929 = vst [vmem:[%s928] sm:$0xff] %v926
        %s930 = smul.u32 %s322, 3
        %s931 = smul.u32 %s19, 4
        %s932 = sadd.s32 %s930, %s931
        %s933 = sadd.s32 %s327, %s932
        %s934 = smul.u32 %s932, 4
        %s935 = smul.addr %s934, 8
        %s936 = scalar_lea.vmem %s291, %s935
        %v937 = vld [vmem:[%s936] sm:$0xff]
        %v938 = vld [vmem:[%s936 + $0x8] sm:$0xff]
        %v939 = vld [vmem:[%s936 + $0x10] sm:$0xff]
        %v940 = vld [vmem:[%s936 + $0x18] sm:$0xff]
        %v941 = vadd.f32 %v937, %v409
        %v942 = vadd.f32 %v938, %v410
        %v943 = vadd.f32 %v939, %v411
        %v944 = vadd.f32 %v940, %v412
        %945 = vmatpush.msra.mxu0 %v390
        %946 = vmatpush.msra.mxu0 %v386
        %947 = vmatpush.msra.mxu0 %v382
        %948 = vmatpush.msra.mxu0 %v378
        %949 = vmatpush.msra.mxu0 %v374
        %950 = vmatpush.msra.mxu0 %v370
        %951 = vmatpush.msra.mxu0 %v366
        %952 = vmatpush.msra.mxu0 %v362
        %953 = vmatpush.msra.mxu0 %v358
        %954 = vmatpush.msra.mxu0 %v354
        %955 = vmatpush.msra.mxu0 %v350
        %956 = vmatpush.msra.mxu0 %v346
        %957 = vmatpush.msra.mxu0 %v342
        %958 = vmatpush.msra.mxu0 %v338
        %959 = vmatpush.msra.mxu0 %v334
        %960 = vmatpush.msra.mxu0 %v330
        %961 = vmatmul.f32.gmra.mxu0 %v924
        %v962 = vpop.f32.mrf.mxu0
        %v963 = vadd.f32 0.0, %v962
        %964 = vdwg.mxu0
        %965 = vmatpush.msra.mxu0 %v391
        %966 = vmatpush.msra.mxu0 %v387
        %967 = vmatpush.msra.mxu0 %v383
        %968 = vmatpush.msra.mxu0 %v379
        %969 = vmatpush.msra.mxu0 %v375
        %970 = vmatpush.msra.mxu0 %v371
        %971 = vmatpush.msra.mxu0 %v367
        %972 = vmatpush.msra.mxu0 %v363
        %973 = vmatpush.msra.mxu0 %v359
        %974 = vmatpush.msra.mxu0 %v355
        %975 = vmatpush.msra.mxu0 %v351
        %976 = vmatpush.msra.mxu0 %v347
        %977 = vmatpush.msra.mxu0 %v343
        %978 = vmatpush.msra.mxu0 %v339
        %979 = vmatpush.msra.mxu0 %v335
        %980 = vmatpush.msra.mxu0 %v331
        %981 = vmatmul.f32.gmra.mxu0 %v924
        %v982 = vpop.f32.mrf.mxu0
        %v983 = vadd.f32 0.0, %v982
        %984 = vdwg.mxu0
        %985 = vmatpush.msra.mxu0 %v392
        %986 = vmatpush.msra.mxu0 %v388
        %987 = vmatpush.msra.mxu0 %v384
        %988 = vmatpush.msra.mxu0 %v380
        %989 = vmatpush.msra.mxu0 %v376
        %990 = vmatpush.msra.mxu0 %v372
        %991 = vmatpush.msra.mxu0 %v368
        %992 = vmatpush.msra.mxu0 %v364
        %993 = vmatpush.msra.mxu0 %v360
        %994 = vmatpush.msra.mxu0 %v356
        %995 = vmatpush.msra.mxu0 %v352
        %996 = vmatpush.msra.mxu0 %v348
        %997 = vmatpush.msra.mxu0 %v344
        %998 = vmatpush.msra.mxu0 %v340
        %999 = vmatpush.msra.mxu0 %v336
        %1000 = vmatpush.msra.mxu0 %v332
        %1001 = vmatmul.f32.gmra.mxu0 %v924
        %v1002 = vpop.f32.mrf.mxu0
        %v1003 = vadd.f32 0.0, %v1002
        %1004 = vdwg.mxu0
        %1005 = vmatpush.msra.mxu0 %v393
        %1006 = vmatpush.msra.mxu0 %v389
        %1007 = vmatpush.msra.mxu0 %v385
        %1008 = vmatpush.msra.mxu0 %v381
        %1009 = vmatpush.msra.mxu0 %v377
        %1010 = vmatpush.msra.mxu0 %v373
        %1011 = vmatpush.msra.mxu0 %v369
        %1012 = vmatpush.msra.mxu0 %v365
        %1013 = vmatpush.msra.mxu0 %v361
        %1014 = vmatpush.msra.mxu0 %v357
        %1015 = vmatpush.msra.mxu0 %v353
        %1016 = vmatpush.msra.mxu0 %v349
        %1017 = vmatpush.msra.mxu0 %v345
        %1018 = vmatpush.msra.mxu0 %v341
        %1019 = vmatpush.msra.mxu0 %v337
        %1020 = vmatpush.msra.mxu0 %v333
        %1021 = vmatmul.f32.gmra.mxu0 %v924
        %v1022 = vpop.f32.mrf.mxu0
        %v1023 = vadd.f32 0.0, %v1022
        %1024 = vdwg.mxu0
        %v1025 = vadd.f32 %v941, %v963
        %v1026 = vadd.f32 %v942, %v983
        %v1027 = vadd.f32 %v943, %v1003
        %v1028 = vadd.f32 %v944, %v1023
        %v1029 = vxor.u32 %v1025, 2147483648
        %v1030 = vmul.f32 %v1029, 1.442695
        %v1031 = vpow.pop %v1030
        %v1032 = vadd.f32 %v1031, 1.0
        %v1033 = vrcp.pop %v1032
        %v1034 = vmul.f32 %v1032, %v1033
        %v1035 = vsub.f32 1.0, %v1034
        %v1036 = vmul.f32 %v1033, %v1035
        %v1037 = vadd.f32 %v1033, %v1036
        %vm1038 = vweird.f32 %v1032
        %vm1039 = vweird.f32 %v1033
        %vm1040 = vmor %vm1038, %vm1039
        %v1041 = vsel %vm1040, %v1033, %v1037
        %v1042 = vand.u32 2147483647, %v1032
        %vm1043 = vcmp.eq.f32.partialorder %v1042, 8.507059e+37
        %v1044 = vand.u32 %v1032, 2147483648
        %v1045 = vor.u32 1.1754944e-38, %v1044
        %v1046 = vsel %vm1043, %v1045, %v1041
        %v1047 = vmul.f32 1.0, %v1046
        %v1048 = vxor.u32 %v1026, 2147483648
        %v1049 = vmul.f32 %v1048, 1.442695
        %v1050 = vpow.pop %v1049
        %v1051 = vadd.f32 %v1050, 1.0
        %v1052 = vrcp.pop %v1051
        %v1053 = vmul.f32 %v1051, %v1052
        %v1054 = vsub.f32 1.0, %v1053
        %v1055 = vmul.f32 %v1052, %v1054
        %v1056 = vadd.f32 %v1052, %v1055
        %vm1057 = vweird.f32 %v1051
        %vm1058 = vweird.f32 %v1052
        %vm1059 = vmor %vm1057, %vm1058
        %v1060 = vsel %vm1059, %v1052, %v1056
        %v1061 = vand.u32 2147483647, %v1051
        %vm1062 = vcmp.eq.f32.partialorder %v1061, 8.507059e+37
        %v1063 = vand.u32 %v1051, 2147483648
        %v1064 = vor.u32 1.1754944e-38, %v1063
        %v1065 = vsel %vm1062, %v1064, %v1060
        %v1066 = vmul.f32 1.0, %v1065
        %v1067 = vtanh.pop %v1027
        %v1068 = vxor.u32 %v1028, 2147483648
        %v1069 = vmul.f32 %v1068, 1.442695
        %v1070 = vpow.pop %v1069
        %v1071 = vadd.f32 %v1070, 1.0
        %v1072 = vrcp.pop %v1071
        %v1073 = vmul.f32 %v1071, %v1072
        %v1074 = vsub.f32 1.0, %v1073
        %v1075 = vmul.f32 %v1072, %v1074
        %v1076 = vadd.f32 %v1072, %v1075
        %vm1077 = vweird.f32 %v1071
        %vm1078 = vweird.f32 %v1072
        %vm1079 = vmor %vm1077, %vm1078
        %v1080 = vsel %vm1079, %v1072, %v1076
        %v1081 = vand.u32 2147483647, %v1071
        %vm1082 = vcmp.eq.f32.partialorder %v1081, 8.507059e+37
        %v1083 = vand.u32 %v1071, 2147483648
        %v1084 = vor.u32 1.1754944e-38, %v1083
        %v1085 = vsel %vm1082, %v1084, %v1080
        %v1086 = vmul.f32 1.0, %v1085
        %v1087 = vmul.f32 %v1066, %v925
        %v1088 = vmul.f32 %v1047, %v1067
        %v1089 = vadd.f32 %v1087, %v1088
        %v1090 = vtanh.pop %v1089
        %v1091 = vmul.f32 %v1086, %v1090
        %v1092 = vstv %s933
        %vm1093 = vcmp.lt.s32.totalorder %v1092, %v328
        %v1094 = vsel %vm1093, 1, 0
        %1095 = vset.pattern.permute.xlu0 0
        %1096 = vperm.xlu0 %1095, %v1094
        %v1097 = vpop.permute.xlu0 %1096
        %vm1098 = vcmp.eq.s32.totalorder %v1097, 1
        %v1099 = vsel %vm1098, %v1091, %v924
        %v1100 = vsel %vm1098, %v1089, %v925
        %v1101 = vsel %vm1098, %v1091, 0.0
        %s1102 = smul.u32 %s932, 8
        %s1103 = scalar_lea.vmem %s276, %s1102 [#allocation4]
        %1104 = vst [vmem:[%s1103] sm:$0xff] %v1101
        %s1105 = smul.u32 %s322, 4
        %s1106 = smul.u32 %s19, 3
        %s1107 = sadd.s32 %s1105, %s1106
        %s1108 = sadd.s32 %s327, %s1107
        %s1109 = smul.u32 %s1107, 4
        %s1110 = smul.addr %s1109, 8
        %s1111 = scalar_lea.vmem %s291, %s1110
        %v1112 = vld [vmem:[%s1111] sm:$0xff]
        %v1113 = vld [vmem:[%s1111 + $0x8] sm:$0xff]
        %v1114 = vld [vmem:[%s1111 + $0x10] sm:$0xff]
        %v1115 = vld [vmem:[%s1111 + $0x18] sm:$0xff]
        %v1116 = vadd.f32 %v1112, %v409
        %v1117 = vadd.f32 %v1113, %v410
        %v1118 = vadd.f32 %v1114, %v411
        %v1119 = vadd.f32 %v1115, %v412
        %1120 = vmatpush.msra.mxu0 %v390
        %1121 = vmatpush.msra.mxu0 %v386
        %1122 = vmatpush.msra.mxu0 %v382
        %1123 = vmatpush.msra.mxu0 %v378
        %1124 = vmatpush.msra.mxu0 %v374
        %1125 = vmatpush.msra.mxu0 %v370
        %1126 = vmatpush.msra.mxu0 %v366
        %1127 = vmatpush.msra.mxu0 %v362
        %1128 = vmatpush.msra.mxu0 %v358
        %1129 = vmatpush.msra.mxu0 %v354
        %1130 = vmatpush.msra.mxu0 %v350
        %1131 = vmatpush.msra.mxu0 %v346
        %1132 = vmatpush.msra.mxu0 %v342
        %1133 = vmatpush.msra.mxu0 %v338
        %1134 = vmatpush.msra.mxu0 %v334
        %1135 = vmatpush.msra.mxu0 %v330
        %1136 = vmatmul.f32.gmra.mxu0 %v1099
        %v1137 = vpop.f32.mrf.mxu0
        %v1138 = vadd.f32 0.0, %v1137
        %1139 = vdwg.mxu0
        %1140 = vmatpush.msra.mxu0 %v391
        %1141 = vmatpush.msra.mxu0 %v387
        %1142 = vmatpush.msra.mxu0 %v383
        %1143 = vmatpush.msra.mxu0 %v379
        %1144 = vmatpush.msra.mxu0 %v375
        %1145 = vmatpush.msra.mxu0 %v371
        %1146 = vmatpush.msra.mxu0 %v367
        %1147 = vmatpush.msra.mxu0 %v363
        %1148 = vmatpush.msra.mxu0 %v359
        %1149 = vmatpush.msra.mxu0 %v355
        %1150 = vmatpush.msra.mxu0 %v351
        %1151 = vmatpush.msra.mxu0 %v347
        %1152 = vmatpush.msra.mxu0 %v343
        %1153 = vmatpush.msra.mxu0 %v339
        %1154 = vmatpush.msra.mxu0 %v335
        %1155 = vmatpush.msra.mxu0 %v331
        %1156 = vmatmul.f32.gmra.mxu0 %v1099
        %v1157 = vpop.f32.mrf.mxu0
        %v1158 = vadd.f32 0.0, %v1157
        %1159 = vdwg.mxu0
        %1160 = vmatpush.msra.mxu0 %v392
        %1161 = vmatpush.msra.mxu0 %v388
        %1162 = vmatpush.msra.mxu0 %v384
        %1163 = vmatpush.msra.mxu0 %v380
        %1164 = vmatpush.msra.mxu0 %v376
        %1165 = vmatpush.msra.mxu0 %v372
        %1166 = vmatpush.msra.mxu0 %v368
        %1167 = vmatpush.msra.mxu0 %v364
        %1168 = vmatpush.msra.mxu0 %v360
        %1169 = vmatpush.msra.mxu0 %v356
        %1170 = vmatpush.msra.mxu0 %v352
        %1171 = vmatpush.msra.mxu0 %v348
        %1172 = vmatpush.msra.mxu0 %v344
        %1173 = vmatpush.msra.mxu0 %v340
        %1174 = vmatpush.msra.mxu0 %v336
        %1175 = vmatpush.msra.mxu0 %v332
        %1176 = vmatmul.f32.gmra.mxu0 %v1099
        %v1177 = vpop.f32.mrf.mxu0
        %v1178 = vadd.f32 0.0, %v1177
        %1179 = vdwg.mxu0
        %1180 = vmatpush.msra.mxu0 %v393
        %1181 = vmatpush.msra.mxu0 %v389
        %1182 = vmatpush.msra.mxu0 %v385
        %1183 = vmatpush.msra.mxu0 %v381
        %1184 = vmatpush.msra.mxu0 %v377
        %1185 = vmatpush.msra.mxu0 %v373
        %1186 = vmatpush.msra.mxu0 %v369
        %1187 = vmatpush.msra.mxu0 %v365
        %1188 = vmatpush.msra.mxu0 %v361
        %1189 = vmatpush.msra.mxu0 %v357
        %1190 = vmatpush.msra.mxu0 %v353
        %1191 = vmatpush.msra.mxu0 %v349
        %1192 = vmatpush.msra.mxu0 %v345
        %1193 = vmatpush.msra.mxu0 %v341
        %1194 = vmatpush.msra.mxu0 %v337
        %1195 = vmatpush.msra.mxu0 %v333
        %1196 = vmatmul.f32.gmra.mxu0 %v1099
        %v1197 = vpop.f32.mrf.mxu0
        %v1198 = vadd.f32 0.0, %v1197
        %1199 = vdwg.mxu0
        %v1200 = vadd.f32 %v1116, %v1138
        %v1201 = vadd.f32 %v1117, %v1158
        %v1202 = vadd.f32 %v1118, %v1178
        %v1203 = vadd.f32 %v1119, %v1198
        %v1204 = vxor.u32 %v1200, 2147483648
        %v1205 = vmul.f32 %v1204, 1.442695
        %v1206 = vpow.pop %v1205
        %v1207 = vadd.f32 %v1206, 1.0
        %v1208 = vrcp.pop %v1207
        %v1209 = vmul.f32 %v1207, %v1208
        %v1210 = vsub.f32 1.0, %v1209
        %v1211 = vmul.f32 %v1208, %v1210
        %v1212 = vadd.f32 %v1208, %v1211
        %vm1213 = vweird.f32 %v1207
        %vm1214 = vweird.f32 %v1208
        %vm1215 = vmor %vm1213, %vm1214
        %v1216 = vsel %vm1215, %v1208, %v1212
        %v1217 = vand.u32 2147483647, %v1207
        %vm1218 = vcmp.eq.f32.partialorder %v1217, 8.507059e+37
        %v1219 = vand.u32 %v1207, 2147483648
        %v1220 = vor.u32 1.1754944e-38, %v1219
        %v1221 = vsel %vm1218, %v1220, %v1216
        %v1222 = vmul.f32 1.0, %v1221
        %v1223 = vxor.u32 %v1201, 2147483648
        %v1224 = vmul.f32 %v1223, 1.442695
        %v1225 = vpow.pop %v1224
        %v1226 = vadd.f32 %v1225, 1.0
        %v1227 = vrcp.pop %v1226
        %v1228 = vmul.f32 %v1226, %v1227
        %v1229 = vsub.f32 1.0, %v1228
        %v1230 = vmul.f32 %v1227, %v1229
        %v1231 = vadd.f32 %v1227, %v1230
        %vm1232 = vweird.f32 %v1226
        %vm1233 = vweird.f32 %v1227
        %vm1234 = vmor %vm1232, %vm1233
        %v1235 = vsel %vm1234, %v1227, %v1231
        %v1236 = vand.u32 2147483647, %v1226
        %vm1237 = vcmp.eq.f32.partialorder %v1236, 8.507059e+37
        %v1238 = vand.u32 %v1226, 2147483648
        %v1239 = vor.u32 1.1754944e-38, %v1238
        %v1240 = vsel %vm1237, %v1239, %v1235
        %v1241 = vmul.f32 1.0, %v1240
        %v1242 = vtanh.pop %v1202
        %v1243 = vxor.u32 %v1203, 2147483648
        %v1244 = vmul.f32 %v1243, 1.442695
        %v1245 = vpow.pop %v1244
        %v1246 = vadd.f32 %v1245, 1.0
        %v1247 = vrcp.pop %v1246
        %v1248 = vmul.f32 %v1246, %v1247
        %v1249 = vsub.f32 1.0, %v1248
        %v1250 = vmul.f32 %v1247, %v1249
        %v1251 = vadd.f32 %v1247, %v1250
        %vm1252 = vweird.f32 %v1246
        %vm1253 = vweird.f32 %v1247
        %vm1254 = vmor %vm1252, %vm1253
        %v1255 = vsel %vm1254, %v1247, %v1251
        %v1256 = vand.u32 2147483647, %v1246
        %vm1257 = vcmp.eq.f32.partialorder %v1256, 8.507059e+37
        %v1258 = vand.u32 %v1246, 2147483648
        %v1259 = vor.u32 1.1754944e-38, %v1258
        %v1260 = vsel %vm1257, %v1259, %v1255
        %v1261 = vmul.f32 1.0, %v1260
        %v1262 = vmul.f32 %v1241, %v1100
        %v1263 = vmul.f32 %v1222, %v1242
        %v1264 = vadd.f32 %v1262, %v1263
        %v1265 = vtanh.pop %v1264
        %v1266 = vmul.f32 %v1261, %v1265
        %v1267 = vstv %s1108
        %vm1268 = vcmp.lt.s32.totalorder %v1267, %v328
        %v1269 = vsel %vm1268, 1, 0
        %1270 = vset.pattern.permute.xlu0 0
        %1271 = vperm.xlu0 %1270, %v1269
        %v1272 = vpop.permute.xlu0 %1271
        %vm1273 = vcmp.eq.s32.totalorder %v1272, 1
        %v1274 = vsel %vm1273, %v1266, %v1099
        %v1275 = vsel %vm1273, %v1264, %v1100
        %v1276 = vsel %vm1273, %v1266, 0.0
        %s1277 = smul.u32 %s1107, 8
        %s1278 = scalar_lea.vmem %s276, %s1277 [#allocation4]
        %1279 = vst [vmem:[%s1278] sm:$0xff] %v1276
        %s1280 = smul.u32 %s322, 5
        %s1281 = smul.u32 %s19, 2
        %s1282 = sadd.s32 %s1280, %s1281
        %s1283 = sadd.s32 %s327, %s1282
        %s1284 = smul.u32 %s1282, 4
        %s1285 = smul.addr %s1284, 8
        %s1286 = scalar_lea.vmem %s291, %s1285
        %v1287 = vld [vmem:[%s1286] sm:$0xff]
        %v1288 = vld [vmem:[%s1286 + $0x8] sm:$0xff]
        %v1289 = vld [vmem:[%s1286 + $0x10] sm:$0xff]
        %v1290 = vld [vmem:[%s1286 + $0x18] sm:$0xff]
        %v1291 = vadd.f32 %v1287, %v409
        %v1292 = vadd.f32 %v1288, %v410
        %v1293 = vadd.f32 %v1289, %v411
        %v1294 = vadd.f32 %v1290, %v412
        %1295 = vmatpush.msra.mxu0 %v390
        %1296 = vmatpush.msra.mxu0 %v386
        %1297 = vmatpush.msra.mxu0 %v382
        %1298 = vmatpush.msra.mxu0 %v378
        %1299 = vmatpush.msra.mxu0 %v374
        %1300 = vmatpush.msra.mxu0 %v370
        %1301 = vmatpush.msra.mxu0 %v366
        %1302 = vmatpush.msra.mxu0 %v362
        %1303 = vmatpush.msra.mxu0 %v358
        %1304 = vmatpush.msra.mxu0 %v354
        %1305 = vmatpush.msra.mxu0 %v350
        %1306 = vmatpush.msra.mxu0 %v346
        %1307 = vmatpush.msra.mxu0 %v342
        %1308 = vmatpush.msra.mxu0 %v338
        %1309 = vmatpush.msra.mxu0 %v334
        %1310 = vmatpush.msra.mxu0 %v330
        %1311 = vmatmul.f32.gmra.mxu0 %v1274
        %v1312 = vpop.f32.mrf.mxu0
        %v1313 = vadd.f32 0.0, %v1312
        %1314 = vdwg.mxu0
        %1315 = vmatpush.msra.mxu0 %v391
        %1316 = vmatpush.msra.mxu0 %v387
        %1317 = vmatpush.msra.mxu0 %v383
        %1318 = vmatpush.msra.mxu0 %v379
        %1319 = vmatpush.msra.mxu0 %v375
        %1320 = vmatpush.msra.mxu0 %v371
        %1321 = vmatpush.msra.mxu0 %v367
        %1322 = vmatpush.msra.mxu0 %v363
        %1323 = vmatpush.msra.mxu0 %v359
        %1324 = vmatpush.msra.mxu0 %v355
        %1325 = vmatpush.msra.mxu0 %v351
        %1326 = vmatpush.msra.mxu0 %v347
        %1327 = vmatpush.msra.mxu0 %v343
        %1328 = vmatpush.msra.mxu0 %v339
        %1329 = vmatpush.msra.mxu0 %v335
        %1330 = vmatpush.msra.mxu0 %v331
        %1331 = vmatmul.f32.gmra.mxu0 %v1274
        %v1332 = vpop.f32.mrf.mxu0
        %v1333 = vadd.f32 0.0, %v1332
        %1334 = vdwg.mxu0
        %1335 = vmatpush.msra.mxu0 %v392
        %1336 = vmatpush.msra.mxu0 %v388
        %1337 = vmatpush.msra.mxu0 %v384
        %1338 = vmatpush.msra.mxu0 %v380
        %1339 = vmatpush.msra.mxu0 %v376
        %1340 = vmatpush.msra.mxu0 %v372
        %1341 = vmatpush.msra.mxu0 %v368
        %1342 = vmatpush.msra.mxu0 %v364
        %1343 = vmatpush.msra.mxu0 %v360
        %1344 = vmatpush.msra.mxu0 %v356
        %1345 = vmatpush.msra.mxu0 %v352
        %1346 = vmatpush.msra.mxu0 %v348
        %1347 = vmatpush.msra.mxu0 %v344
        %1348 = vmatpush.msra.mxu0 %v340
        %1349 = vmatpush.msra.mxu0 %v336
        %1350 = vmatpush.msra.mxu0 %v332
        %1351 = vmatmul.f32.gmra.mxu0 %v1274
        %v1352 = vpop.f32.mrf.mxu0
        %v1353 = vadd.f32 0.0, %v1352
        %1354 = vdwg.mxu0
        %1355 = vmatpush.msra.mxu0 %v393
        %1356 = vmatpush.msra.mxu0 %v389
        %1357 = vmatpush.msra.mxu0 %v385
        %1358 = vmatpush.msra.mxu0 %v381
        %1359 = vmatpush.msra.mxu0 %v377
        %1360 = vmatpush.msra.mxu0 %v373
        %1361 = vmatpush.msra.mxu0 %v369
        %1362 = vmatpush.msra.mxu0 %v365
        %1363 = vmatpush.msra.mxu0 %v361
        %1364 = vmatpush.msra.mxu0 %v357
        %1365 = vmatpush.msra.mxu0 %v353
        %1366 = vmatpush.msra.mxu0 %v349
        %1367 = vmatpush.msra.mxu0 %v345
        %1368 = vmatpush.msra.mxu0 %v341
        %1369 = vmatpush.msra.mxu0 %v337
        %1370 = vmatpush.msra.mxu0 %v333
        %1371 = vmatmul.f32.gmra.mxu0 %v1274
        %v1372 = vpop.f32.mrf.mxu0
        %v1373 = vadd.f32 0.0, %v1372
        %1374 = vdwg.mxu0
        %v1375 = vadd.f32 %v1291, %v1313
        %v1376 = vadd.f32 %v1292, %v1333
        %v1377 = vadd.f32 %v1293, %v1353
        %v1378 = vadd.f32 %v1294, %v1373
        %v1379 = vxor.u32 %v1375, 2147483648
        %v1380 = vmul.f32 %v1379, 1.442695
        %v1381 = vpow.pop %v1380
        %v1382 = vadd.f32 %v1381, 1.0
        %v1383 = vrcp.pop %v1382
        %v1384 = vmul.f32 %v1382, %v1383
        %v1385 = vsub.f32 1.0, %v1384
        %v1386 = vmul.f32 %v1383, %v1385
        %v1387 = vadd.f32 %v1383, %v1386
        %vm1388 = vweird.f32 %v1382
        %vm1389 = vweird.f32 %v1383
        %vm1390 = vmor %vm1388, %vm1389
        %v1391 = vsel %vm1390, %v1383, %v1387
        %v1392 = vand.u32 2147483647, %v1382
        %vm1393 = vcmp.eq.f32.partialorder %v1392, 8.507059e+37
        %v1394 = vand.u32 %v1382, 2147483648
        %v1395 = vor.u32 1.1754944e-38, %v1394
        %v1396 = vsel %vm1393, %v1395, %v1391
        %v1397 = vmul.f32 1.0, %v1396
        %v1398 = vxor.u32 %v1376, 2147483648
        %v1399 = vmul.f32 %v1398, 1.442695
        %v1400 = vpow.pop %v1399
        %v1401 = vadd.f32 %v1400, 1.0
        %v1402 = vrcp.pop %v1401
        %v1403 = vmul.f32 %v1401, %v1402
        %v1404 = vsub.f32 1.0, %v1403
        %v1405 = vmul.f32 %v1402, %v1404
        %v1406 = vadd.f32 %v1402, %v1405
        %vm1407 = vweird.f32 %v1401
        %vm1408 = vweird.f32 %v1402
        %vm1409 = vmor %vm1407, %vm1408
        %v1410 = vsel %vm1409, %v1402, %v1406
        %v1411 = vand.u32 2147483647, %v1401
        %vm1412 = vcmp.eq.f32.partialorder %v1411, 8.507059e+37
        %v1413 = vand.u32 %v1401, 2147483648
        %v1414 = vor.u32 1.1754944e-38, %v1413
        %v1415 = vsel %vm1412, %v1414, %v1410
        %v1416 = vmul.f32 1.0, %v1415
        %v1417 = vtanh.pop %v1377
        %v1418 = vxor.u32 %v1378, 2147483648
        %v1419 = vmul.f32 %v1418, 1.442695
        %v1420 = vpow.pop %v1419
        %v1421 = vadd.f32 %v1420, 1.0
        %v1422 = vrcp.pop %v1421
        %v1423 = vmul.f32 %v1421, %v1422
        %v1424 = vsub.f32 1.0, %v1423
        %v1425 = vmul.f32 %v1422, %v1424
        %v1426 = vadd.f32 %v1422, %v1425
        %vm1427 = vweird.f32 %v1421
        %vm1428 = vweird.f32 %v1422
        %vm1429 = vmor %vm1427, %vm1428
        %v1430 = vsel %vm1429, %v1422, %v1426
        %v1431 = vand.u32 2147483647, %v1421
        %vm1432 = vcmp.eq.f32.partialorder %v1431, 8.507059e+37
        %v1433 = vand.u32 %v1421, 2147483648
        %v1434 = vor.u32 1.1754944e-38, %v1433
        %v1435 = vsel %vm1432, %v1434, %v1430
        %v1436 = vmul.f32 1.0, %v1435
        %v1437 = vmul.f32 %v1416, %v1275
        %v1438 = vmul.f32 %v1397, %v1417
        %v1439 = vadd.f32 %v1437, %v1438
        %v1440 = vtanh.pop %v1439
        %v1441 = vmul.f32 %v1436, %v1440
        %v1442 = vstv %s1283
        %vm1443 = vcmp.lt.s32.totalorder %v1442, %v328
        %v1444 = vsel %vm1443, 1, 0
        %1445 = vset.pattern.permute.xlu0 0
        %1446 = vperm.xlu0 %1445, %v1444
        %v1447 = vpop.permute.xlu0 %1446
        %vm1448 = vcmp.eq.s32.totalorder %v1447, 1
        %v1449 = vsel %vm1448, %v1441, %v1274
        %v1450 = vsel %vm1448, %v1439, %v1275
        %v1451 = vsel %vm1448, %v1441, 0.0
        %s1452 = smul.u32 %s1282, 8
        %s1453 = scalar_lea.vmem %s276, %s1452 [#allocation4]
        %1454 = vst [vmem:[%s1453] sm:$0xff] %v1451
        %s1455 = smul.u32 %s322, 6
        %s1456 = sadd.s32 %s1455, %s19
        %s1457 = sadd.s32 %s327, %s1456
        %s1458 = smul.u32 %s1456, 4
        %s1459 = smul.addr %s1458, 8
        %s1460 = scalar_lea.vmem %s291, %s1459
        %v1461 = vld [vmem:[%s1460] sm:$0xff]
        %v1462 = vld [vmem:[%s1460 + $0x8] sm:$0xff]
        %v1463 = vld [vmem:[%s1460 + $0x10] sm:$0xff]
        %v1464 = vld [vmem:[%s1460 + $0x18] sm:$0xff]
        %v1465 = vadd.f32 %v1461, %v409
        %v1466 = vadd.f32 %v1462, %v410
        %v1467 = vadd.f32 %v1463, %v411
        %v1468 = vadd.f32 %v1464, %v412
        %1469 = vmatpush.msra.mxu0 %v390
        %1470 = vmatpush.msra.mxu0 %v386
        %1471 = vmatpush.msra.mxu0 %v382
        %1472 = vmatpush.msra.mxu0 %v378
        %1473 = vmatpush.msra.mxu0 %v374
        %1474 = vmatpush.msra.mxu0 %v370
        %1475 = vmatpush.msra.mxu0 %v366
        %1476 = vmatpush.msra.mxu0 %v362
        %1477 = vmatpush.msra.mxu0 %v358
        %1478 = vmatpush.msra.mxu0 %v354
        %1479 = vmatpush.msra.mxu0 %v350
        %1480 = vmatpush.msra.mxu0 %v346
        %1481 = vmatpush.msra.mxu0 %v342
        %1482 = vmatpush.msra.mxu0 %v338
        %1483 = vmatpush.msra.mxu0 %v334
        %1484 = vmatpush.msra.mxu0 %v330
        %1485 = vmatmul.f32.gmra.mxu0 %v1449
        %v1486 = vpop.f32.mrf.mxu0
        %v1487 = vadd.f32 0.0, %v1486
        %1488 = vdwg.mxu0
        %1489 = vmatpush.msra.mxu0 %v391
        %1490 = vmatpush.msra.mxu0 %v387
        %1491 = vmatpush.msra.mxu0 %v383
        %1492 = vmatpush.msra.mxu0 %v379
        %1493 = vmatpush.msra.mxu0 %v375
        %1494 = vmatpush.msra.mxu0 %v371
        %1495 = vmatpush.msra.mxu0 %v367
        %1496 = vmatpush.msra.mxu0 %v363
        %1497 = vmatpush.msra.mxu0 %v359
        %1498 = vmatpush.msra.mxu0 %v355
        %1499 = vmatpush.msra.mxu0 %v351
        %1500 = vmatpush.msra.mxu0 %v347
        %1501 = vmatpush.msra.mxu0 %v343
        %1502 = vmatpush.msra.mxu0 %v339
        %1503 = vmatpush.msra.mxu0 %v335
        %1504 = vmatpush.msra.mxu0 %v331
        %1505 = vmatmul.f32.gmra.mxu0 %v1449
        %v1506 = vpop.f32.mrf.mxu0
        %v1507 = vadd.f32 0.0, %v1506
        %1508 = vdwg.mxu0
        %1509 = vmatpush.msra.mxu0 %v392
        %1510 = vmatpush.msra.mxu0 %v388
        %1511 = vmatpush.msra.mxu0 %v384
        %1512 = vmatpush.msra.mxu0 %v380
        %1513 = vmatpush.msra.mxu0 %v376
        %1514 = vmatpush.msra.mxu0 %v372
        %1515 = vmatpush.msra.mxu0 %v368
        %1516 = vmatpush.msra.mxu0 %v364
        %1517 = vmatpush.msra.mxu0 %v360
        %1518 = vmatpush.msra.mxu0 %v356
        %1519 = vmatpush.msra.mxu0 %v352
        %1520 = vmatpush.msra.mxu0 %v348
        %1521 = vmatpush.msra.mxu0 %v344
        %1522 = vmatpush.msra.mxu0 %v340
        %1523 = vmatpush.msra.mxu0 %v336
        %1524 = vmatpush.msra.mxu0 %v332
        %1525 = vmatmul.f32.gmra.mxu0 %v1449
        %v1526 = vpop.f32.mrf.mxu0
        %v1527 = vadd.f32 0.0, %v1526
        %1528 = vdwg.mxu0
        %1529 = vmatpush.msra.mxu0 %v393
        %1530 = vmatpush.msra.mxu0 %v389
        %1531 = vmatpush.msra.mxu0 %v385
        %1532 = vmatpush.msra.mxu0 %v381
        %1533 = vmatpush.msra.mxu0 %v377
        %1534 = vmatpush.msra.mxu0 %v373
        %1535 = vmatpush.msra.mxu0 %v369
        %1536 = vmatpush.msra.mxu0 %v365
        %1537 = vmatpush.msra.mxu0 %v361
        %1538 = vmatpush.msra.mxu0 %v357
        %1539 = vmatpush.msra.mxu0 %v353
        %1540 = vmatpush.msra.mxu0 %v349
        %1541 = vmatpush.msra.mxu0 %v345
        %1542 = vmatpush.msra.mxu0 %v341
        %1543 = vmatpush.msra.mxu0 %v337
        %1544 = vmatpush.msra.mxu0 %v333
        %1545 = vmatmul.f32.gmra.mxu0 %v1449
        %v1546 = vpop.f32.mrf.mxu0
        %v1547 = vadd.f32 0.0, %v1546
        %1548 = vdwg.mxu0
        %v1549 = vadd.f32 %v1465, %v1487
        %v1550 = vadd.f32 %v1466, %v1507
        %v1551 = vadd.f32 %v1467, %v1527
        %v1552 = vadd.f32 %v1468, %v1547
        %v1553 = vxor.u32 %v1549, 2147483648
        %v1554 = vmul.f32 %v1553, 1.442695
        %v1555 = vpow.pop %v1554
        %v1556 = vadd.f32 %v1555, 1.0
        %v1557 = vrcp.pop %v1556
        %v1558 = vmul.f32 %v1556, %v1557
        %v1559 = vsub.f32 1.0, %v1558
        %v1560 = vmul.f32 %v1557, %v1559
        %v1561 = vadd.f32 %v1557, %v1560
        %vm1562 = vweird.f32 %v1556
        %vm1563 = vweird.f32 %v1557
        %vm1564 = vmor %vm1562, %vm1563
        %v1565 = vsel %vm1564, %v1557, %v1561
        %v1566 = vand.u32 2147483647, %v1556
        %vm1567 = vcmp.eq.f32.partialorder %v1566, 8.507059e+37
        %v1568 = vand.u32 %v1556, 2147483648
        %v1569 = vor.u32 1.1754944e-38, %v1568
        %v1570 = vsel %vm1567, %v1569, %v1565
        %v1571 = vmul.f32 1.0, %v1570
        %v1572 = vxor.u32 %v1550, 2147483648
        %v1573 = vmul.f32 %v1572, 1.442695
        %v1574 = vpow.pop %v1573
        %v1575 = vadd.f32 %v1574, 1.0
        %v1576 = vrcp.pop %v1575
        %v1577 = vmul.f32 %v1575, %v1576
        %v1578 = vsub.f32 1.0, %v1577
        %v1579 = vmul.f32 %v1576, %v1578
        %v1580 = vadd.f32 %v1576, %v1579
        %vm1581 = vweird.f32 %v1575
        %vm1582 = vweird.f32 %v1576
        %vm1583 = vmor %vm1581, %vm1582
        %v1584 = vsel %vm1583, %v1576, %v1580
        %v1585 = vand.u32 2147483647, %v1575
        %vm1586 = vcmp.eq.f32.partialorder %v1585, 8.507059e+37
        %v1587 = vand.u32 %v1575, 2147483648
        %v1588 = vor.u32 1.1754944e-38, %v1587
        %v1589 = vsel %vm1586, %v1588, %v1584
        %v1590 = vmul.f32 1.0, %v1589
        %v1591 = vtanh.pop %v1551
        %v1592 = vxor.u32 %v1552, 2147483648
        %v1593 = vmul.f32 %v1592, 1.442695
        %v1594 = vpow.pop %v1593
        %v1595 = vadd.f32 %v1594, 1.0
        %v1596 = vrcp.pop %v1595
        %v1597 = vmul.f32 %v1595, %v1596
        %v1598 = vsub.f32 1.0, %v1597
        %v1599 = vmul.f32 %v1596, %v1598
        %v1600 = vadd.f32 %v1596, %v1599
        %vm1601 = vweird.f32 %v1595
        %vm1602 = vweird.f32 %v1596
        %vm1603 = vmor %vm1601, %vm1602
        %v1604 = vsel %vm1603, %v1596, %v1600
        %v1605 = vand.u32 2147483647, %v1595
        %vm1606 = vcmp.eq.f32.partialorder %v1605, 8.507059e+37
        %v1607 = vand.u32 %v1595, 2147483648
        %v1608 = vor.u32 1.1754944e-38, %v1607
        %v1609 = vsel %vm1606, %v1608, %v1604
        %v1610 = vmul.f32 1.0, %v1609
        %v1611 = vmul.f32 %v1590, %v1450
        %v1612 = vmul.f32 %v1571, %v1591
        %v1613 = vadd.f32 %v1611, %v1612
        %v1614 = vtanh.pop %v1613
        %v1615 = vmul.f32 %v1610, %v1614
        %v1616 = vstv %s1457
        %vm1617 = vcmp.lt.s32.totalorder %v1616, %v328
        %v1618 = vsel %vm1617, 1, 0
        %1619 = vset.pattern.permute.xlu0 0
        %1620 = vperm.xlu0 %1619, %v1618
        %v1621 = vpop.permute.xlu0 %1620
        %vm1622 = vcmp.eq.s32.totalorder %v1621, 1
        %v1623 = vsel %vm1622, %v1615, %v1449
        %v1624 = vsel %vm1622, %v1613, %v1450
        %v1625 = vsel %vm1622, %v1615, 0.0
        %s1626 = smul.u32 %s1456, 8
        %s1627 = scalar_lea.vmem %s276, %s1626 [#allocation4]
        %1628 = vst [vmem:[%s1627] sm:$0xff] %v1625
        %s1629 = smul.u32 %s322, 7
        %s1630 = sadd.s32 %s327, %s1629
        %s1631 = smul.u32 %s1629, 4
        %s1632 = smul.addr %s1631, 8
        %s1633 = scalar_lea.vmem %s291, %s1632
        %v1634 = vld [vmem:[%s1633] sm:$0xff]
        %v1635 = vld [vmem:[%s1633 + $0x8] sm:$0xff]
        %v1636 = vld [vmem:[%s1633 + $0x10] sm:$0xff]
        %v1637 = vld [vmem:[%s1633 + $0x18] sm:$0xff]
        %v1638 = vadd.f32 %v1634, %v409
        %v1639 = vadd.f32 %v1635, %v410
        %v1640 = vadd.f32 %v1636, %v411
        %v1641 = vadd.f32 %v1637, %v412
        %1642 = vmatpush.msra.mxu0 %v390
        %1643 = vmatpush.msra.mxu0 %v386
        %1644 = vmatpush.msra.mxu0 %v382
        %1645 = vmatpush.msra.mxu0 %v378
        %1646 = vmatpush.msra.mxu0 %v374
        %1647 = vmatpush.msra.mxu0 %v370
        %1648 = vmatpush.msra.mxu0 %v366
        %1649 = vmatpush.msra.mxu0 %v362
        %1650 = vmatpush.msra.mxu0 %v358
        %1651 = vmatpush.msra.mxu0 %v354
        %1652 = vmatpush.msra.mxu0 %v350
        %1653 = vmatpush.msra.mxu0 %v346
        %1654 = vmatpush.msra.mxu0 %v342
        %1655 = vmatpush.msra.mxu0 %v338
        %1656 = vmatpush.msra.mxu0 %v334
        %1657 = vmatpush.msra.mxu0 %v330
        %1658 = vmatmul.f32.gmra.mxu0 %v1623
        %v1659 = vpop.f32.mrf.mxu0
        %v1660 = vadd.f32 0.0, %v1659
        %1661 = vdwg.mxu0
        %1662 = vmatpush.msra.mxu0 %v391
        %1663 = vmatpush.msra.mxu0 %v387
        %1664 = vmatpush.msra.mxu0 %v383
        %1665 = vmatpush.msra.mxu0 %v379
        %1666 = vmatpush.msra.mxu0 %v375
        %1667 = vmatpush.msra.mxu0 %v371
        %1668 = vmatpush.msra.mxu0 %v367
        %1669 = vmatpush.msra.mxu0 %v363
        %1670 = vmatpush.msra.mxu0 %v359
        %1671 = vmatpush.msra.mxu0 %v355
        %1672 = vmatpush.msra.mxu0 %v351
        %1673 = vmatpush.msra.mxu0 %v347
        %1674 = vmatpush.msra.mxu0 %v343
        %1675 = vmatpush.msra.mxu0 %v339
        %1676 = vmatpush.msra.mxu0 %v335
        %1677 = vmatpush.msra.mxu0 %v331
        %1678 = vmatmul.f32.gmra.mxu0 %v1623
        %v1679 = vpop.f32.mrf.mxu0
        %v1680 = vadd.f32 0.0, %v1679
        %1681 = vdwg.mxu0
        %1682 = vmatpush.msra.mxu0 %v392
        %1683 = vmatpush.msra.mxu0 %v388
        %1684 = vmatpush.msra.mxu0 %v384
        %1685 = vmatpush.msra.mxu0 %v380
        %1686 = vmatpush.msra.mxu0 %v376
        %1687 = vmatpush.msra.mxu0 %v372
        %1688 = vmatpush.msra.mxu0 %v368
        %1689 = vmatpush.msra.mxu0 %v364
        %1690 = vmatpush.msra.mxu0 %v360
        %1691 = vmatpush.msra.mxu0 %v356
        %1692 = vmatpush.msra.mxu0 %v352
        %1693 = vmatpush.msra.mxu0 %v348
        %1694 = vmatpush.msra.mxu0 %v344
        %1695 = vmatpush.msra.mxu0 %v340
        %1696 = vmatpush.msra.mxu0 %v336
        %1697 = vmatpush.msra.mxu0 %v332
        %1698 = vmatmul.f32.gmra.mxu0 %v1623
        %v1699 = vpop.f32.mrf.mxu0
        %v1700 = vadd.f32 0.0, %v1699
        %1701 = vdwg.mxu0
        %1702 = vmatpush.msra.mxu0 %v393
        %1703 = vmatpush.msra.mxu0 %v389
        %1704 = vmatpush.msra.mxu0 %v385
        %1705 = vmatpush.msra.mxu0 %v381
        %1706 = vmatpush.msra.mxu0 %v377
        %1707 = vmatpush.msra.mxu0 %v373
        %1708 = vmatpush.msra.mxu0 %v369
        %1709 = vmatpush.msra.mxu0 %v365
        %1710 = vmatpush.msra.mxu0 %v361
        %1711 = vmatpush.msra.mxu0 %v357
        %1712 = vmatpush.msra.mxu0 %v353
        %1713 = vmatpush.msra.mxu0 %v349
        %1714 = vmatpush.msra.mxu0 %v345
        %1715 = vmatpush.msra.mxu0 %v341
        %1716 = vmatpush.msra.mxu0 %v337
        %1717 = vmatpush.msra.mxu0 %v333
        %1718 = vmatmul.f32.gmra.mxu0 %v1623
        %v1719 = vpop.f32.mrf.mxu0
        %v1720 = vadd.f32 0.0, %v1719
        %1721 = vdwg.mxu0
        %v1722 = vadd.f32 %v1638, %v1660
        %v1723 = vadd.f32 %v1639, %v1680
        %v1724 = vadd.f32 %v1640, %v1700
        %v1725 = vadd.f32 %v1641, %v1720
        %v1726 = vxor.u32 %v1722, 2147483648
        %v1727 = vmul.f32 %v1726, 1.442695
        %v1728 = vpow.pop %v1727
        %v1729 = vadd.f32 %v1728, 1.0
        %v1730 = vrcp.pop %v1729
        %v1731 = vmul.f32 %v1729, %v1730
        %v1732 = vsub.f32 1.0, %v1731
        %v1733 = vmul.f32 %v1730, %v1732
        %v1734 = vadd.f32 %v1730, %v1733
        %vm1735 = vweird.f32 %v1729
        %vm1736 = vweird.f32 %v1730
        %vm1737 = vmor %vm1735, %vm1736
        %v1738 = vsel %vm1737, %v1730, %v1734
        %v1739 = vand.u32 2147483647, %v1729
        %vm1740 = vcmp.eq.f32.partialorder %v1739, 8.507059e+37
        %v1741 = vand.u32 %v1729, 2147483648
        %v1742 = vor.u32 1.1754944e-38, %v1741
        %v1743 = vsel %vm1740, %v1742, %v1738
        %v1744 = vmul.f32 1.0, %v1743
        %v1745 = vxor.u32 %v1723, 2147483648
        %v1746 = vmul.f32 %v1745, 1.442695
        %v1747 = vpow.pop %v1746
        %v1748 = vadd.f32 %v1747, 1.0
        %v1749 = vrcp.pop %v1748
        %v1750 = vmul.f32 %v1748, %v1749
        %v1751 = vsub.f32 1.0, %v1750
        %v1752 = vmul.f32 %v1749, %v1751
        %v1753 = vadd.f32 %v1749, %v1752
        %vm1754 = vweird.f32 %v1748
        %vm1755 = vweird.f32 %v1749
        %vm1756 = vmor %vm1754, %vm1755
        %v1757 = vsel %vm1756, %v1749, %v1753
        %v1758 = vand.u32 2147483647, %v1748
        %vm1759 = vcmp.eq.f32.partialorder %v1758, 8.507059e+37
        %v1760 = vand.u32 %v1748, 2147483648
        %v1761 = vor.u32 1.1754944e-38, %v1760
        %v1762 = vsel %vm1759, %v1761, %v1757
        %v1763 = vmul.f32 1.0, %v1762
        %v1764 = vtanh.pop %v1724
        %v1765 = vxor.u32 %v1725, 2147483648
        %v1766 = vmul.f32 %v1765, 1.442695
        %v1767 = vpow.pop %v1766
        %v1768 = vadd.f32 %v1767, 1.0
        %v1769 = vrcp.pop %v1768
        %v1770 = vmul.f32 %v1768, %v1769
        %v1771 = vsub.f32 1.0, %v1770
        %v1772 = vmul.f32 %v1769, %v1771
        %v1773 = vadd.f32 %v1769, %v1772
        %vm1774 = vweird.f32 %v1768
        %vm1775 = vweird.f32 %v1769
        %vm1776 = vmor %vm1774, %vm1775
        %v1777 = vsel %vm1776, %v1769, %v1773
        %v1778 = vand.u32 2147483647, %v1768
        %vm1779 = vcmp.eq.f32.partialorder %v1778, 8.507059e+37
        %v1780 = vand.u32 %v1768, 2147483648
        %v1781 = vor.u32 1.1754944e-38, %v1780
        %v1782 = vsel %vm1779, %v1781, %v1777
        %v1783 = vmul.f32 1.0, %v1782
        %v1784 = vmul.f32 %v1763, %v1624
        %v1785 = vmul.f32 %v1744, %v1764
        %v1786 = vadd.f32 %v1784, %v1785
        %v1787 = vtanh.pop %v1786
        %v1788 = vmul.f32 %v1783, %v1787
        %v1789 = vstv %s1630
        %vm1790 = vcmp.lt.s32.totalorder %v1789, %v328
        %v1791 = vsel %vm1790, 1, 0
        %1792 = vset.pattern.permute.xlu0 0
        %1793 = vperm.xlu0 %1792, %v1791
        %v1794 = vpop.permute.xlu0 %1793
        %vm1795 = vcmp.eq.s32.totalorder %v1794, 1
        %v1796 = vsel %vm1795, %v1788, %v1623
        %v1797 = vsel %vm1795, %v1786, %v1624
        %v1798 = vsel %vm1795, %v1788, 0.0
        %s1799 = smul.u32 %s1629, 8
        %s1800 = scalar_lea.vmem %s276, %s1799 [#allocation4]
        %1801 = vst [vmem:[%s1800] sm:$0xff] %v1798
        %1802 = vst [vmem:[%s395] sm:$0xff] %v1796
        %1803 = vst [vmem:[%s397] sm:$0xff] %v1797
        %s1804 = sand.u32 %s158, 1
        %s1805 = sand.u32 %s158, 1
        %s1806 = smul.addr %s1805, 64
        %s1807 = scalar_lea.vmem [#allocation4], %s1806
        // Predicated region
        $region41: #{_bilstm_full.1} parent=35 // pred_check
          %p1808 = pneg %p168
        $region42: #{_bilstm_full.1} parent=35 // pred_check_branch
          %1810 = sbr.rel (%p1808) target = $region44
        $region43: #{_bilstm_full.1} parent=35 // pred_region
          %s1811 = ssub.s32 1, %s19
          %s1812 = smul.u32 %s1811, %s20
          %s1813 = ssub.s32 0, %s20
          %s1814 = smul.u32 %s19, %s1813
          %s1815 = sadd.s32 %s1812, %s1814
          %s1816 = smul.u32 8, %s1815
          %s1817 = smul.addr %s1816, 2
          %s1818 = sadd.s32 %s19, %s1817
          %s1819 = smul.addr %s1818, 8
          %s1820 = scalar_lea.vmem %s4, %s1819
          // Predicated region
          $region45: #{_bilstm_full.1} parent=43 // pred_check
            _
          $region46: #{_bilstm_full.1} parent=43 // pred_check_branch
            %1822 = sbr.rel (0) target = $region48
          $region47: #{_bilstm_full.1} parent=43 // pred_region
            // Predicated region
            $region49: #{_bilstm_full.1} parent=47 // pred_check
              _
            $region50: #{_bilstm_full.1} parent=47 // pred_check_branch
              %1824 = sbr.rel (0) target = $region52
            $region51: #{_bilstm_full.1} parent=47 // pred_region
              // Predicated region
              $region64: #{_bilstm_full.1} parent=51 // pred_check
                _
              $region65: #{_bilstm_full.1} parent=51 // pred_check_branch
                %1854 = sbr.rel (0) target = $region67
              $region66: #{_bilstm_full.1} parent=51 // pred_region
                loop: start=0, step=1, limit=1
                $region68: #{_bilstm_full.1} parent=66 // loop_pre_header
                  _
                $region69: #{_bilstm_full.1} parent=66 // loop_header
                  %s1856 = sphi 0, %s1860
                  %p1857 = scmp.ge.s32.totalorder %s1856, 1
                  %s1861 = sphi %s1807, %s1807
                  %s1862 = sphi %s1820, %s1820
                $region70: #{_bilstm_full.1} parent=66 // loop_header_branch
                  %1859 = sbr.rel (%p1857) target = $region74
                $region71: #{_bilstm_full.1} parent=66 // loop_body
                  %v1863 = vld [vmem:[%s1861] sm:$0xff]
                  %1864 = vst [vmem:[%s1862] sm:$0xff] %v1863
                  %v1865 = vld [vmem:[%s1861 + $0x8] sm:$0xff]
                  %1866 = vst [vmem:[%s1862 + $0x10] sm:$0xff] %v1865
                  %v1867 = vld [vmem:[%s1861 + $0x10] sm:$0xff]
                  %1868 = vst [vmem:[%s1862 + $0x20] sm:$0xff] %v1867
                  %v1869 = vld [vmem:[%s1861 + $0x18] sm:$0xff]
                  %1870 = vst [vmem:[%s1862 + $0x30] sm:$0xff] %v1869
                  %v1871 = vld [vmem:[%s1861 + $0x20] sm:$0xff]
                  %1872 = vst [vmem:[%s1862 + $0x40] sm:$0xff] %v1871
                  %v1873 = vld [vmem:[%s1861 + $0x28] sm:$0xff]
                  %1874 = vst [vmem:[%s1862 + $0x50] sm:$0xff] %v1873
                  %v1875 = vld [vmem:[%s1861 + $0x30] sm:$0xff]
                  %1876 = vst [vmem:[%s1862 + $0x60] sm:$0xff] %v1875
                  %v1877 = vld [vmem:[%s1861 + $0x38] sm:$0xff]
                  %1878 = vst [vmem:[%s1862 + $0x70] sm:$0xff] %v1877
                $region72: #{_bilstm_full.1} parent=66 // loop_footer
                  %s1860 = sadd.s32 1, %s1856
                $region73: #{_bilstm_full.1} parent=66 // loop_footer_branch
                  %1855 = sbr.rel target = $region69
                $region74: #{_bilstm_full.1} parent=66 // loop_exit
                  _
              $region67: #{_bilstm_full.1} parent=51 // pred_fallthru
                _
              // Predicated region
              $region75: #{_bilstm_full.1} parent=51 // pred_check
                _
              $region76: #{_bilstm_full.1} parent=51 // pred_check_branch
                %1880 = sbr.rel target = $region78
              $region77: #{_bilstm_full.1} parent=51 // pred_region
                _
              $region78: #{_bilstm_full.1} parent=51 // pred_fallthru
                _
            $region52: #{_bilstm_full.1} parent=47 // pred_fallthru
              _
            // Predicated region
            $region53: #{_bilstm_full.1} parent=47 // pred_check
              _
            $region54: #{_bilstm_full.1} parent=47 // pred_check_branch
              %1826 = sbr.rel target = $region56
            $region55: #{_bilstm_full.1} parent=47 // pred_region
              %s1828 = ssub.s32 256, 1
              loop: start=0, step=1, limit=1
              $region57: #{_bilstm_full.1} parent=55 // loop_pre_header
                _
              $region58: #{_bilstm_full.1} parent=55 // loop_header
                %s1830 = sphi 0, %s1834
                %p1831 = scmp.ge.s32.totalorder %s1830, 1
                %s1835 = sphi %s1807, %s1807
                %s1836 = sphi %s1820, %s1820
              $region59: #{_bilstm_full.1} parent=55 // loop_header_branch
                %1833 = sbr.rel (%p1831) target = $region63
              $region60: #{_bilstm_full.1} parent=55 // loop_body
                %v1837 = vld [vmem:[%s1835] sm:%s1828]
                %1838 = vst [vmem:[%s1836] sm:%s1828] %v1837
                %v1839 = vld [vmem:[%s1835 + $0x8] sm:%s1828]
                %1840 = vst [vmem:[%s1836 + $0x10] sm:%s1828] %v1839
                %v1841 = vld [vmem:[%s1835 + $0x10] sm:%s1828]
                %1842 = vst [vmem:[%s1836 + $0x20] sm:%s1828] %v1841
                %v1843 = vld [vmem:[%s1835 + $0x18] sm:%s1828]
                %1844 = vst [vmem:[%s1836 + $0x30] sm:%s1828] %v1843
                %v1845 = vld [vmem:[%s1835 + $0x20] sm:%s1828]
                %1846 = vst [vmem:[%s1836 + $0x40] sm:%s1828] %v1845
                %v1847 = vld [vmem:[%s1835 + $0x28] sm:%s1828]
                %1848 = vst [vmem:[%s1836 + $0x50] sm:%s1828] %v1847
                %v1849 = vld [vmem:[%s1835 + $0x30] sm:%s1828]
                %1850 = vst [vmem:[%s1836 + $0x60] sm:%s1828] %v1849
                %v1851 = vld [vmem:[%s1835 + $0x38] sm:%s1828]
                %1852 = vst [vmem:[%s1836 + $0x70] sm:%s1828] %v1851
              $region61: #{_bilstm_full.1} parent=55 // loop_footer
                %s1834 = sadd.s32 1, %s1830
              $region62: #{_bilstm_full.1} parent=55 // loop_footer_branch
                %1829 = sbr.rel target = $region58
              $region63: #{_bilstm_full.1} parent=55 // loop_exit
                _
            $region56: #{_bilstm_full.1} parent=47 // pred_fallthru
              _
          $region48: #{_bilstm_full.1} parent=43 // pred_fallthru
            _
          %1881 = vnop
        $region44: #{_bilstm_full.1} parent=35 // pred_fallthru
          _
      $region36: #{_bilstm_full.1} parent=5 // pred_fallthru
        _
      %p1882 = scmp.le.s32.totalorder 2, %s10
      // Predicated region
      $region79: #{_bilstm_full.1} parent=5 // pred_check
        %p1883 = pneg %p1882
      $region80: #{_bilstm_full.1} parent=5 // pred_check_branch
        %1885 = sbr.rel (%p1883) target = $region82
      $region81: #{_bilstm_full.1} parent=5 // pred_region
        %s1886 = ssub.s32 %s10, 2
        // Predicated region
        $region83: #{_bilstm_full.1} parent=81 // pred_check
          %p1887 = pneg %p174
        $region84: #{_bilstm_full.1} parent=81 // pred_check_branch
          %1889 = sbr.rel (%p1887) target = $region86
        $region85: #{_bilstm_full.1} parent=81 // pred_region
          %s1890 = sand.u32 %s159, 1
          %s1891 = sand.u32 %s159, 1
          %s1892 = smul.addr %s1891, 64
          %s1893 = scalar_lea.vmem [#allocation4], %s1892
        $region86: #{_bilstm_full.1} parent=81 // pred_fallthru
          _
      $region82: #{_bilstm_full.1} parent=5 // pred_fallthru
        _
    $region6: #{_bilstm_full.1} parent=1 // loop_footer
      %s14 = sadd.s32 1, %s10
    $region7: #{_bilstm_full.1} parent=1 // loop_footer_branch
      %9 = sbr.rel target = $region3
    $region8: #{_bilstm_full.1} parent=1 // loop_exit
      _

</llo_original>
